<compile_context>
chip_gen: v7x
topology: tpu7x:2x2x1
jax: 0.10.0
libtpu: 0.0.40
codegen_flags: <defaults>
</compile_context>

<pallas_src>
import functools

import jax
import jax.numpy as jnp
from jax.experimental import pallas as pl
from jax.experimental.pallas import tpu as pltpu


# ---------------------------------------------------------------------------
# helpers
# ---------------------------------------------------------------------------
def _round_up(x, m):
    return (x + m - 1) // m * m


def _pick_tm(np_):
    """Row-tile size: largest of {2048,1024,512,256} dividing Np that keeps
    >= 2 row tiles (both v7x TensorCores busy) and whose int8 full-K row block
    stays <= 8 MiB (double-buffered it is well inside VMEM on all chips)."""
    for cand in (2048, 1024, 512, 256):
        if np_ % cand == 0 and np_ // cand >= 2 and cand * np_ <= 8 * 1024 * 1024:
            return cand
    return np_  # tiny graphs: single row tile


# ---------------------------------------------------------------------------
# Kernel 1:  Z2 = D^-1/2 * ( relu( D^-1/2 * ((A+I) @ Z1) + b1 ) @ W2 )
#   (Z1 = D^-1/2 * (X @ W1) is pre-scaled in the XLA glue;  W2 fused here.)
# ---------------------------------------------------------------------------
def _layer1_kernel(a_ref, z1_ref, dinv_ref, b1_ref, w2_ref, out_ref):
    # a_ref   : (tm, Np) int8 0/1 (A+I) row block
    # z1_ref  : (Np, Hp) bf16 resident RHS
    # dinv_ref: (tm, 1)  f32  D^-1/2 for this row tile
    # b1_ref  : (1, Hp)  f32  resident bias
    # w2_ref  : (Hp, Cp) bf16 resident layer-2 weight (fused GEMM)
    a = a_ref[...].astype(jnp.float32).astype(jnp.bfloat16)  # 0/1, exact
    acc = jnp.dot(a, z1_ref[...], preferred_element_type=jnp.float32)
    h = jnp.maximum(acc * dinv_ref[...] + b1_ref[...], 0.0)
    # TODO(synk): training-mode dropout (p=0.5) would use pltpu.prng_seed /
    # pltpu.prng_random_bits; inference path is identity.
    z2 = jnp.dot(h.astype(jnp.bfloat16), w2_ref[...],
                 preferred_element_type=jnp.float32)
    out_ref[...] = (z2 * dinv_ref[...]).astype(out_ref.dtype)


def _layer1(a_bin, z1, dinv, b1, w2, *, tm):
    np_ = a_bin.shape[0]
    hp = z1.shape[1]
    cp = w2.shape[1]
    return pl.pallas_call(
        _layer1_kernel,
        out_shape=jax.ShapeDtypeStruct((np_, cp), jnp.bfloat16),
        grid_spec=pltpu.PrefetchScalarGridSpec(
            num_scalar_prefetch=0,
            grid=(np_ // tm,),
            in_specs=[
                pl.BlockSpec((tm, np_), lambda i: (i, 0)),   # int8 A row block
                pl.BlockSpec((np_, hp), lambda i: (0, 0)),   # Z1 resident
                pl.BlockSpec((tm, 1), lambda i: (i, 0)),     # D^-1/2 rows
                pl.BlockSpec((1, hp), lambda i: (0, 0)),     # bias resident
                pl.BlockSpec((hp, cp), lambda i: (0, 0)),    # W2 resident
            ],
            out_specs=pl.BlockSpec((tm, cp), lambda i: (i, 0)),
        ),
        compiler_params=pltpu.CompilerParams(
            dimension_semantics=("parallel",),
            vmem_limit_bytes=64 * 1024 * 1024,
        ),
    )(a_bin, z1, dinv, b1, w2)


# ---------------------------------------------------------------------------
# Kernel 2:  OUT = log_softmax( D^-1/2 * ((A+I) @ Z2) + b2 )   (masked lanes)
# ---------------------------------------------------------------------------
def _layer2_kernel(a_ref, z2_ref, dinv_ref, b2_ref, out_ref, *, valid_cols):
    a = a_ref[...].astype(jnp.float32).astype(jnp.bfloat16)
    acc = jnp.dot(a, z2_ref[...], preferred_element_type=jnp.float32)
    z = acc * dinv_ref[...] + b2_ref[...]
    col = jax.lax.broadcasted_iota(jnp.int32, z.shape, 1)
    valid = col < valid_cols
    zm = jnp.where(valid, z, -jnp.inf)
    m = jnp.max(zm, axis=1, keepdims=True)
    e = jnp.where(valid, jnp.exp(z - m), 0.0)
    lse = m + jnp.log(jnp.sum(e, axis=1, keepdims=True))
    out_ref[...] = (z - lse).astype(out_ref.dtype)


def _layer2(a_bin, z2, dinv, b2, *, tm, valid_cols):
    np_ = a_bin.shape[0]
    cp = z2.shape[1]
    kernel = functools.partial(_layer2_kernel, valid_cols=valid_cols)
    return pl.pallas_call(
        kernel,
        out_shape=jax.ShapeDtypeStruct((np_, cp), jnp.float32),
        grid_spec=pltpu.PrefetchScalarGridSpec(
            num_scalar_prefetch=0,
            grid=(np_ // tm,),
            in_specs=[
                pl.BlockSpec((tm, np_), lambda i: (i, 0)),   # int8 A row block
                pl.BlockSpec((np_, cp), lambda i: (0, 0)),   # Z2 resident
                pl.BlockSpec((tm, 1), lambda i: (i, 0)),     # D^-1/2 rows
                pl.BlockSpec((1, cp), lambda i: (0, 0)),     # bias resident
            ],
            out_specs=pl.BlockSpec((tm, cp), lambda i: (i, 0)),
        ),
        compiler_params=pltpu.CompilerParams(
            dimension_semantics=("parallel",),
            vmem_limit_bytes=64 * 1024 * 1024,
        ),
    )(a_bin, z2, dinv, b2)


# ---------------------------------------------------------------------------
# Graph-static precompute (hoisted out of the jitted forward)
# ---------------------------------------------------------------------------
def binary_adjacency(edge_index, num_nodes):
    """0/1 (A + I); duplicate edges / pre-existing self loops count once."""
    src, dst = edge_index[0], edge_index[1]
    adj = jnp.zeros((num_nodes, num_nodes), jnp.float32).at[src, dst].set(1.0)
    return jnp.maximum(adj, jnp.eye(num_nodes, dtype=jnp.float32))


def prepare_graph(edge_index, num_nodes, pad_multiple=256):
    """Padded int8 (A+I) and padded f32 D^-1/2 (graph-static, compute once).
    TODO(synk): real graphs are sparse; CSR + PrefetchScalarGridSpec row
    gather would avoid the dense O(N^2) adjacency."""
    adj = binary_adjacency(edge_index, num_nodes)
    deg = adj.sum(axis=1)
    dinv = jnp.where(deg > 0, jax.lax.rsqrt(deg), 0.0)
    np_ = _round_up(num_nodes, pad_multiple)
    a_pad = jnp.zeros((np_, np_), jnp.int8).at[:num_nodes, :num_nodes].set(
        adj.astype(jnp.int8))
    dinv_pad = jnp.zeros((np_, 1), jnp.float32).at[:num_nodes, 0].set(dinv)
    return a_pad, dinv_pad


# ---------------------------------------------------------------------------
# Forward: log_softmax(conv2(relu(conv1(x, A_hat)), A_hat), dim=1)
# ---------------------------------------------------------------------------
def gcn_forward(a_bin_pad, dinv_pad, x, w1, b1, w2, b2):
    n = x.shape[0]
    h = w1.shape[1]
    c = w2.shape[1]
    np_ = a_bin_pad.shape[0]
    hp = _round_up(h, 128)
    cp = _round_up(c, 128)
    tm = _pick_tm(np_)

    # layer-1 dense GEMM in bf16 (f32 acc) + D^-1/2 row pre-scale, then pad.
    xw1 = jnp.dot(x.astype(jnp.bfloat16), w1.astype(jnp.bfloat16),
                  preferred_element_type=jnp.float32)
    z1 = xw1 * dinv_pad[:n]
    z1_p = jnp.zeros((np_, hp), jnp.bfloat16).at[:n, :h].set(
        z1.astype(jnp.bfloat16))
    b1_p = jnp.zeros((1, hp), jnp.float32).at[0, :h].set(b1.astype(jnp.float32))
    w2_p = jnp.zeros((hp, cp), jnp.bfloat16).at[:h, :c].set(
        w2.astype(jnp.bfloat16))
    b2_p = jnp.zeros((1, cp), jnp.float32).at[0, :c].set(b2.astype(jnp.float32))

    # layer 1 (+ fused H @ W2 and layer-2 D^-1/2 pre-scale in the epilogue)
    z2_p = _layer1(a_bin_pad, z1_p, dinv_pad, b1_p, w2_p, tm=tm)

    # layer 2 + masked log_softmax over the class axis
    out_p = _layer2(a_bin_pad, z2_p, dinv_pad, b2_p, tm=tm, valid_cols=c)
    return out_p[:n, :c]


# ---------------------------------------------------------------------------
# Test harness
# ---------------------------------------------------------------------------
def glorot(key, shape):
    fan_in, fan_out = shape
    limit = jnp.sqrt(6.0 / (fan_in + fan_out))
    return jax.random.uniform(key, shape, jnp.float32, -limit, limit)


def _reference_forward(edge_index, x, w1, b1, w2, b2):
    n = x.shape[0]
    adj = binary_adjacency(edge_index, n)
    deg = adj.sum(axis=1)
    dinv = jnp.where(deg > 0, 1.0 / jnp.sqrt(deg), 0.0)
    a_hat = dinv[:, None] * adj * dinv[None, :]
    h = jnp.maximum(a_hat @ (x @ w1) + b1, 0.0)
    z = a_hat @ (h @ w2) + b2
    return jax.nn.log_softmax(z, axis=1)


if __name__ == "__main__":
    # Small deterministic problem: 16 nodes, 8 input feats, 32 hidden, 4 classes.
    N, INPUT_DIM, HIDDEN_DIM, OUTPUT_DIM, NUM_EDGES = 16, 8, 32, 4, 40

    key = jax.random.PRNGKey(0)
    k_x, k_e, k_w1, k_w2 = jax.random.split(key, 4)

    x = jax.random.normal(k_x, (N, INPUT_DIM), jnp.float32)
    edge_index = jax.random.randint(k_e, (2, NUM_EDGES), 0, N, jnp.int32)

    w1 = glorot(k_w1, (INPUT_DIM, HIDDEN_DIM))
    b1 = jnp.zeros((HIDDEN_DIM,), jnp.float32)
    w2 = glorot(k_w2, (HIDDEN_DIM, OUTPUT_DIM))
    b2 = jnp.zeros((OUTPUT_DIM,), jnp.float32)

    # Graph-static precompute, hoisted out of the jitted forward.
    a_bin_pad, dinv_pad = prepare_graph(edge_index, N)

    fwd = jax.jit(gcn_forward)
    out = fwd(a_bin_pad, dinv_pad, x, w1, b1, w2, b2)
    jax.block_until_ready(out)

    assert out.shape == (N, OUTPUT_DIM)

    # Sanity: rows of exp(log_softmax) sum to 1, and match a pure-JAX reference.
    row_sums = jnp.exp(out).sum(axis=1)
    assert bool(jnp.allclose(row_sums, 1.0, atol=2e-2))
    ref = _reference_forward(edge_index, x, w1, b1, w2, b2)
    assert bool(jnp.allclose(out, ref, atol=5e-2))

    print("KERNEL_OK")
</pallas_src>

<mosaic_0001>
module attributes {stable_mosaic.version = 11 : i64} {
  func.func @_layer1_kernel(%arg0: i32, %arg1: memref<256x256xi8, #tpu.memory_space<vmem>>, %arg2: memref<256x128xbf16, #tpu.memory_space<vmem>>, %arg3: memref<256x1xf32, #tpu.memory_space<vmem>>, %arg4: memref<1x128xf32, #tpu.memory_space<vmem>>, %arg5: memref<128x128xbf16, #tpu.memory_space<vmem>>, %arg6: memref<256x128xbf16, #tpu.memory_space<vmem>>) attributes {dimension_semantics = [#tpu.dimension_semantics<parallel>], iteration_bounds = array<i64: 1>, scalar_prefetch = 0 : i64, scratch_operands = 0 : i64, tpu.core_type = #tpu.core_type<tc>, window_params = [{transform_indices = @transform_0, window_bounds = array<i64: 256, 256>}, {pipeline_mode = #tpu.pipeline_mode<synchronous>, transform_indices = @transform_1, window_bounds = array<i64: 256, 128>}, {transform_indices = @transform_2, window_bounds = array<i64: 256, 1>}, {pipeline_mode = #tpu.pipeline_mode<synchronous>, transform_indices = @transform_3, window_bounds = array<i64: 1, 128>}, {pipeline_mode = #tpu.pipeline_mode<synchronous>, transform_indices = @transform_4, window_bounds = array<i64: 128, 128>}, {transform_indices = @transform_5, window_bounds = array<i64: 256, 128>}]} {
    %c0 = arith.constant 0 : index
    %c0_0 = arith.constant 0 : index
    %0 = vector.load %arg1[%c0, %c0_0] : memref<256x256xi8, #tpu.memory_space<vmem>>, vector<256x256xi8>
    %1 = arith.sitofp %0 : vector<256x256xi8> to vector<256x256xf32>
    %2 = arith.truncf %1 : vector<256x256xf32> to vector<256x256xbf16>
    %c0_1 = arith.constant 0 : index
    %c0_2 = arith.constant 0 : index
    %3 = vector.load %arg2[%c0_1, %c0_2] : memref<256x128xbf16, #tpu.memory_space<vmem>>, vector<256x128xbf16>
    %cst = arith.constant dense<0.000000e+00> : vector<256x128xf32>
    %4 = tpu.matmul %2, %3, %cst {dimension_numbers = #tpu.dot_dimension_numbers<[1], [0], [0], [1], [0, 0, 1, 1], [], []>} : vector<256x256xbf16>, vector<256x128xbf16>, vector<256x128xf32> -> vector<256x128xf32>
    %c0_3 = arith.constant 0 : index
    %c0_4 = arith.constant 0 : index
    %5 = vector.load %arg3[%c0_3, %c0_4] : memref<256x1xf32, #tpu.memory_space<vmem>>, vector<256x1xf32>
    %6 = vector.broadcast %5 : vector<256x1xf32> to vector<256x128xf32>
    %7 = arith.mulf %4, %6 : vector<256x128xf32>
    %c0_5 = arith.constant 0 : index
    %c0_6 = arith.constant 0 : index
    %8 = vector.load %arg4[%c0_5, %c0_6] : memref<1x128xf32, #tpu.memory_space<vmem>>, vector<1x128xf32>
    %9 = vector.broadcast %8 : vector<1x128xf32> to vector<256x128xf32>
    %10 = arith.addf %7, %9 : vector<256x128xf32>
    %cst_7 = arith.constant 0.000000e+00 : f32
    %11 = vector.broadcast %cst_7 : f32 to vector<256x128xf32>
    %12 = arith.maximumf %10, %11 : vector<256x128xf32>
    %13 = arith.truncf %12 : vector<256x128xf32> to vector<256x128xbf16>
    %c0_8 = arith.constant 0 : index
    %c0_9 = arith.constant 0 : index
    %14 = vector.load %arg5[%c0_8, %c0_9] : memref<128x128xbf16, #tpu.memory_space<vmem>>, vector<128x128xbf16>
    %cst_10 = arith.constant dense<0.000000e+00> : vector<256x128xf32>
    %15 = tpu.matmul %13, %14, %cst_10 {dimension_numbers = #tpu.dot_dimension_numbers<[1], [0], [0], [1], [0, 0, 1, 1], [], []>} : vector<256x128xbf16>, vector<128x128xbf16>, vector<256x128xf32> -> vector<256x128xf32>
    %c0_11 = arith.constant 0 : index
    %c0_12 = arith.constant 0 : index
    %16 = vector.load %arg3[%c0_11, %c0_12] : memref<256x1xf32, #tpu.memory_space<vmem>>, vector<256x1xf32>
    %17 = vector.broadcast %16 : vector<256x1xf32> to vector<256x128xf32>
    %18 = arith.mulf %15, %17 : vector<256x128xf32>
    %19 = arith.truncf %18 : vector<256x128xf32> to vector<256x128xbf16>
    %c0_13 = arith.constant 0 : index
    %c0_14 = arith.constant 0 : index
    %20 = vector.load %arg6[%c0_13, %c0_14] : memref<256x128xbf16, #tpu.memory_space<vmem>>, vector<256x128xbf16>
    tpu.vector_store %arg6[%c0_13, %c0_14], %19 {strides = array<i32>} : memref<256x128xbf16, #tpu.memory_space<vmem>>, vector<256x128xbf16>,
    return
  }
  func.func @transform_0(%arg0: i32) -> (i32, i32) {
    %c0_i32 = arith.constant 0 : i32
    %c0_i32_0 = arith.constant 0 : i32
    return %arg0, %c0_i32 : i32, i32
  }
  func.func @transform_1(%arg0: i32) -> (i32, i32) {
    %c0_i32 = arith.constant 0 : i32
    %c0_i32_0 = arith.constant 0 : i32
    %c0_i32_1 = arith.constant 0 : i32
    return %c0_i32, %c0_i32_0 : i32, i32
  }
  func.func @transform_2(%arg0: i32) -> (i32, i32) {
    %c0_i32 = arith.constant 0 : i32
    %c0_i32_0 = arith.constant 0 : i32
    return %arg0, %c0_i32 : i32, i32
  }
  func.func @transform_3(%arg0: i32) -> (i32, i32) {
    %c0_i32 = arith.constant 0 : i32
    %c0_i32_0 = arith.constant 0 : i32
    %c0_i32_1 = arith.constant 0 : i32
    return %c0_i32, %c0_i32_0 : i32, i32
  }
  func.func @transform_4(%arg0: i32) -> (i32, i32) {
    %c0_i32 = arith.constant 0 : i32
    %c0_i32_0 = arith.constant 0 : i32
    %c0_i32_1 = arith.constant 0 : i32
    return %c0_i32, %c0_i32_0 : i32, i32
  }
  func.func @transform_5(%arg0: i32) -> (i32, i32) {
    %c0_i32 = arith.constant 0 : i32
    %c0_i32_0 = arith.constant 0 : i32
    return %arg0, %c0_i32 : i32, i32
  }
}

module attributes {stable_mosaic.version = 11 : i64} {
  func.func @_layer2_kernel(%arg0: i32, %arg1: memref<256x256xi8, #tpu.memory_space<vmem>>, %arg2: memref<256x128xbf16, #tpu.memory_space<vmem>>, %arg3: memref<256x1xf32, #tpu.memory_space<vmem>>, %arg4: memref<1x128xf32, #tpu.memory_space<vmem>>, %arg5: memref<256x128xf32, #tpu.memory_space<vmem>>) attributes {dimension_semantics = [#tpu.dimension_semantics<parallel>], iteration_bounds = array<i64: 1>, scalar_prefetch = 0 : i64, scratch_operands = 0 : i64, tpu.core_type = #tpu.core_type<tc>, window_params = [{transform_indices = @transform_0, window_bounds = array<i64: 256, 256>}, {pipeline_mode = #tpu.pipeline_mode<synchronous>, transform_indices = @transform_1, window_bounds = array<i64: 256, 128>}, {transform_indices = @transform_2, window_bounds = array<i64: 256, 1>}, {pipeline_mode = #tpu.pipeline_mode<synchronous>, transform_indices = @transform_3, window_bounds = array<i64: 1, 128>}, {transform_indices = @transform_4, window_bounds = array<i64: 256, 128>}]} {
    %c0 = arith.constant 0 : index
    %c0_0 = arith.constant 0 : index
    %0 = vector.load %arg1[%c0, %c0_0] : memref<256x256xi8, #tpu.memory_space<vmem>>, vector<256x256xi8>
    %1 = arith.sitofp %0 : vector<256x256xi8> to vector<256x256xf32>
    %2 = arith.truncf %1 : vector<256x256xf32> to vector<256x256xbf16>
    %c0_1 = arith.constant 0 : index
    %c0_2 = arith.constant 0 : index
    %3 = vector.load %arg2[%c0_1, %c0_2] : memref<256x128xbf16, #tpu.memory_space<vmem>>, vector<256x128xbf16>
    %cst = arith.constant dense<0.000000e+00> : vector<256x128xf32>
    %4 = tpu.matmul %2, %3, %cst {dimension_numbers = #tpu.dot_dimension_numbers<[1], [0], [0], [1], [0, 0, 1, 1], [], []>} : vector<256x256xbf16>, vector<256x128xbf16>, vector<256x128xf32> -> vector<256x128xf32>
    %c0_3 = arith.constant 0 : index
    %c0_4 = arith.constant 0 : index
    %5 = vector.load %arg3[%c0_3, %c0_4] : memref<256x1xf32, #tpu.memory_space<vmem>>, vector<256x1xf32>
    %6 = vector.broadcast %5 : vector<256x1xf32> to vector<256x128xf32>
    %7 = arith.mulf %4, %6 : vector<256x128xf32>
    %c0_5 = arith.constant 0 : index
    %c0_6 = arith.constant 0 : index
    %8 = vector.load %arg4[%c0_5, %c0_6] : memref<1x128xf32, #tpu.memory_space<vmem>>, vector<1x128xf32>
    %9 = vector.broadcast %8 : vector<1x128xf32> to vector<256x128xf32>
    %10 = arith.addf %7, %9 : vector<256x128xf32>
    %11 = tpu.iota {dimensions = array<i32: 1>} : vector<256x128xi32>
    %c4_i32 = arith.constant 4 : i32
    %12 = vector.broadcast %c4_i32 : i32 to vector<256x128xi32>
    %13 = arith.cmpi slt, %11, %12 : vector<256x128xi32>
    %cst_7 = arith.constant 0xFF800000 : f32
    %14 = vector.broadcast %cst_7 : f32 to vector<256x128xf32>
    %15 = arith.select %13, %10, %14 : vector<256x128xi1>, vector<256x128xf32>
    %cst_8 = arith.constant dense<0xFF800000> : vector<256xf32>
    %16 = vector.multi_reduction <maximumf>, %15, %cst_8 [1] : vector<256x128xf32> to vector<256xf32>
    %17 = vector.shape_cast %16 : vector<256xf32> to vector<256x1xf32>
    %18 = vector.broadcast %17 : vector<256x1xf32> to vector<256x128xf32>
    %19 = arith.subf %10, %18 : vector<256x128xf32>
    %20 = math.exp %19 : vector<256x128xf32>
    %cst_9 = arith.constant 0.000000e+00 : f32
    %21 = vector.broadcast %cst_9 : f32 to vector<256x128xf32>
    %22 = arith.select %13, %20, %21 : vector<256x128xi1>, vector<256x128xf32>
    %cst_10 = arith.constant dense<0.000000e+00> : vector<256xf32>
    %23 = vector.multi_reduction <add>, %22, %cst_10 [1] : vector<256x128xf32> to vector<256xf32>
    %24 = vector.shape_cast %23 : vector<256xf32> to vector<256x1xf32>
    %25 = math.log %24 : vector<256x1xf32>
    %26 = arith.addf %17, %25 : vector<256x1xf32>
    %27 = vector.broadcast %26 : vector<256x1xf32> to vector<256x128xf32>
    %28 = arith.subf %10, %27 : vector<256x128xf32>
    %c0_11 = arith.constant 0 : index
    %c0_12 = arith.constant 0 : index
    %29 = vector.load %arg5[%c0_11, %c0_12] : memref<256x128xf32, #tpu.memory_space<vmem>>, vector<256x128xf32>
    tpu.vector_store %arg5[%c0_11, %c0_12], %28 {strides = array<i32>} : memref<256x128xf32, #tpu.memory_space<vmem>>, vector<256x128xf32>,
    return
  }
  func.func @transform_0(%arg0: i32) -> (i32, i32) {
    %c0_i32 = arith.constant 0 : i32
    %c0_i32_0 = arith.constant 0 : i32
    return %arg0, %c0_i32 : i32, i32
  }
  func.func @transform_1(%arg0: i32) -> (i32, i32) {
    %c0_i32 = arith.constant 0 : i32
    %c0_i32_0 = arith.constant 0 : i32
    %c0_i32_1 = arith.constant 0 : i32
    return %c0_i32, %c0_i32_0 : i32, i32
  }
  func.func @transform_2(%arg0: i32) -> (i32, i32) {
    %c0_i32 = arith.constant 0 : i32
    %c0_i32_0 = arith.constant 0 : i32
    return %arg0, %c0_i32 : i32, i32
  }
  func.func @transform_3(%arg0: i32) -> (i32, i32) {
    %c0_i32 = arith.constant 0 : i32
    %c0_i32_0 = arith.constant 0 : i32
    %c0_i32_1 = arith.constant 0 : i32
    return %c0_i32, %c0_i32_0 : i32, i32
  }
  func.func @transform_4(%arg0: i32) -> (i32, i32) {
    %c0_i32 = arith.constant 0 : i32
    %c0_i32_0 = arith.constant 0 : i32
    return %arg0, %c0_i32 : i32, i32
  }
}

</mosaic_0001>

<llo_original>
// kernel: gcn_forward.3
$region0: #{gcn_forward.3}
  #allocation0 [shape = 'u32[]', space=smem, size = 0x4, offset = 0x4, fixed_abs, tag = 'smem constant byte address 0x4 - core index']
  #allocation1 [shape = 'u32[144,128]{1,0:T(1,128)}', space=vmem, size = 0x12000, scoped, tag = 'internal scratch']
  %s0 = inlined_call_operand.hbm [shape: s8[256,256], index: 0, kind: input, shape index: {}]
  %s1 = inlined_call_operand.hbm [shape: bf16[256,128], index: 1, kind: input, shape index: {}]
  %s2 = inlined_call_operand.hbm [shape: f32[256,1], index: 2, kind: input, shape index: {}]
  %s3 = inlined_call_operand.hbm [shape: f32[1,128], index: 3, kind: input, shape index: {}]
  %s4 = inlined_call_operand.hbm [shape: f32[256,128], index: 4, kind: output, shape index: {}]
  %s5 = sld [smem:[#allocation0]]
  $region42: #{gcn_forward.3} parent=0
    _
  %s7 = ssub.s32 1, %s5
  %s8 = scalar_select 0, %s7, %s5
  $region1: #{gcn_forward.3} parent=0
    #allocation2 [shape = 'u8[65536]{0}', space=vmem, size = 0x10000, scoped, tag = 'input window, operand 0, single buffered']
    #allocation3 [shape = 's32[1]{0}', space=sflag, size = 0x4, scoped, tag = 'scoped memory for gcn_forward.3']
    #allocation4 [shape = 's32[1]{0}', space=sflag, size = 0x4, scoped, tag = 'scoped memory for gcn_forward.3']
    #allocation5 [shape = 'u8[65536]{0}', space=vmem, size = 0x10000, scoped, tag = 'input window, operand 1, single buffered']
    #allocation6 [shape = 's32[1]{0}', space=sflag, size = 0x4, scoped, tag = 'scoped memory for gcn_forward.3']
    #allocation7 [shape = 'u8[131072]{0}', space=vmem, size = 0x20000, scoped, tag = 'input window, operand 2, single buffered']
    #allocation8 [shape = 'u8[512]{0}', space=vmem, size = 0x400, scoped, tag = 'input window, operand 3, single buffered']
    #allocation9 [shape = 's32[1]{0}', space=sflag, size = 0x4, scoped, tag = 'scoped memory for gcn_forward.3']
    #allocation10 [shape = 'u8[131072]{0}', space=vmem, size = 0x20000, scoped, tag = 'output window, operand 0, single buffered']
    %9 = vsyncpa [#allocation3], 0
    %10 = vsyncpa [#allocation6], 0
    %11 = vsyncpa [#allocation9], 0
    %12 = vsyncpa [#allocation4], 0
    // Predicated region
    $region2: #{gcn_forward.3} parent=1 // pred_check
      _
    $region3: #{gcn_forward.3} parent=1 // pred_check_branch
      %14 = sbr.rel (0) target = $region5
    $region4: #{gcn_forward.3} parent=1 // pred_region
      %s16 = ssub.s32 2048, 2048
      %17 = vsyncadd [#allocation3], %s16
      %s18 = sshll.u32 [#allocation2], 4
      %s19 = int_to_ptr.vmem [resolvable:$true] %s18
      %24 = dma.hbm_to_vmem [thread:$0]  %s0, 2048, %s19, [#allocation3], 256, 256, 16
    $region5: #{gcn_forward.3} parent=1 // pred_fallthru
      _
    // Predicated region
    $region6: #{gcn_forward.3} parent=1 // pred_check
      _
    $region7: #{gcn_forward.3} parent=1 // pred_check_branch
      %26 = sbr.rel (0) target = $region9
    $region8: #{gcn_forward.3} parent=1 // pred_region
      %s28 = ssub.s32 2048, 2048
      %29 = vsyncadd [#allocation6], %s28
      %s30 = sshll.u32 [#allocation5], 4
      %s31 = int_to_ptr.vmem [resolvable:$true] %s30
      %36 = dma.hbm_to_vmem [thread:$0]  %s1, 2048, %s31, [#allocation6], 64, 64, 4
    $region9: #{gcn_forward.3} parent=1 // pred_fallthru
      _
    // Predicated region
    $region10: #{gcn_forward.3} parent=1 // pred_check
      _
    $region11: #{gcn_forward.3} parent=1 // pred_check_branch
      %38 = sbr.rel (0) target = $region13
    $region12: #{gcn_forward.3} parent=1 // pred_region
      %s40 = ssub.s32 4096, 4096
      %41 = vsyncadd [#allocation6], %s40
      %s42 = sshll.u32 [#allocation7], 4
      %s43 = int_to_ptr.vmem [resolvable:$true] %s42
      %48 = dma.hbm_to_vmem [thread:$0]  %s2, 4096, %s43, [#allocation6], 128, 128, 8
    $region13: #{gcn_forward.3} parent=1 // pred_fallthru
      _
    // Predicated region
    $region14: #{gcn_forward.3} parent=1 // pred_check
      _
    $region15: #{gcn_forward.3} parent=1 // pred_check_branch
      %50 = sbr.rel (0) target = $region17
    $region16: #{gcn_forward.3} parent=1 // pred_region
      %s52 = ssub.s32 16, 16
      %53 = vsyncadd [#allocation9], %s52
      %s55 = sshll.u32 [#allocation8], 4
      %s56 = int_to_ptr.vmem [resolvable:$true] %s55
      %58 = dma.hbm_to_vmem [thread:$0]  %s3, 16, %s56, [#allocation9]
    $region17: #{gcn_forward.3} parent=1 // pred_fallthru
      _
    // Predicated region
    $region18: #{gcn_forward.3} parent=1 // pred_check
      _
    $region19: #{gcn_forward.3} parent=1 // pred_check_branch
      %60 = sbr.rel (0) target = $region21
    $region20: #{gcn_forward.3} parent=1 // pred_region
      %61 = dma.done [#allocation3], 2048
    $region21: #{gcn_forward.3} parent=1 // pred_fallthru
      _
    // Predicated region
    $region22: #{gcn_forward.3} parent=1 // pred_check
      _
    $region23: #{gcn_forward.3} parent=1 // pred_check_branch
      %63 = sbr.rel (0) target = $region25
    $region24: #{gcn_forward.3} parent=1 // pred_region
      %64 = dma.done [#allocation6], 2048
    $region25: #{gcn_forward.3} parent=1 // pred_fallthru
      _
    // Predicated region
    $region26: #{gcn_forward.3} parent=1 // pred_check
      _
    $region27: #{gcn_forward.3} parent=1 // pred_check_branch
      %66 = sbr.rel (0) target = $region29
    $region28: #{gcn_forward.3} parent=1 // pred_region
      %67 = dma.done [#allocation6], 4096
    $region29: #{gcn_forward.3} parent=1 // pred_fallthru
      _
    // Predicated region
    $region30: #{gcn_forward.3} parent=1 // pred_check
      _
    $region31: #{gcn_forward.3} parent=1 // pred_check_branch
      %69 = sbr.rel (0) target = $region33
    $region32: #{gcn_forward.3} parent=1 // pred_region
      %70 = dma.done [#allocation9], 16
    $region33: #{gcn_forward.3} parent=1 // pred_fallthru
      _
    %v72 = vld [vmem:[#allocation2] sm:$0xff]
    %v73 = vld [vmem:[#allocation2 + $0x8] sm:$0xff]
    %v74 = vld [vmem:[#allocation2 + $0x10] sm:$0xff]
    %v75 = vld [vmem:[#allocation2 + $0x18] sm:$0xff]
    %v76 = vld [vmem:[#allocation2 + $0x20] sm:$0xff]
    %v77 = vld [vmem:[#allocation2 + $0x28] sm:$0xff]
    %v78 = vld [vmem:[#allocation2 + $0x30] sm:$0xff]
    %v79 = vld [vmem:[#allocation2 + $0x38] sm:$0xff]
    %v80 = vld [vmem:[#allocation2 + $0x40] sm:$0xff]
    %v81 = vld [vmem:[#allocation2 + $0x48] sm:$0xff]
    %v82 = vld [vmem:[#allocation2 + $0x50] sm:$0xff]
    %v83 = vld [vmem:[#allocation2 + $0x58] sm:$0xff]
    %v84 = vld [vmem:[#allocation2 + $0x60] sm:$0xff]
    %v85 = vld [vmem:[#allocation2 + $0x68] sm:$0xff]
    %v86 = vld [vmem:[#allocation2 + $0x70] sm:$0xff]
    %v87 = vld [vmem:[#allocation2 + $0x78] sm:$0xff]
    %v88 = vunpack.c.l.s8.bf16 %v72
    %v89 = vunpack.c.l.s8.bf16 %v73
    %v90 = vunpack.c.h.s8.bf16 %v72
    %v91 = vunpack.c.h.s8.bf16 %v73
    %v92 = vunpack.c.l.s8.bf16 %v74
    %v93 = vunpack.c.l.s8.bf16 %v75
    %v94 = vunpack.c.h.s8.bf16 %v74
    %v95 = vunpack.c.h.s8.bf16 %v75
    %v96 = vunpack.c.l.s8.bf16 %v76
    %v97 = vunpack.c.l.s8.bf16 %v77
    %v98 = vunpack.c.h.s8.bf16 %v76
    %v99 = vunpack.c.h.s8.bf16 %v77
    %v100 = vunpack.c.l.s8.bf16 %v78
    %v101 = vunpack.c.l.s8.bf16 %v79
    %v102 = vunpack.c.h.s8.bf16 %v78
    %v103 = vunpack.c.h.s8.bf16 %v79
    %v104 = vunpack.c.l.s8.bf16 %v80
    %v105 = vunpack.c.l.s8.bf16 %v81
    %v106 = vunpack.c.h.s8.bf16 %v80
    %v107 = vunpack.c.h.s8.bf16 %v81
    %v108 = vunpack.c.l.s8.bf16 %v82
    %v109 = vunpack.c.l.s8.bf16 %v83
    %v110 = vunpack.c.h.s8.bf16 %v82
    %v111 = vunpack.c.h.s8.bf16 %v83
    %v112 = vunpack.c.l.s8.bf16 %v84
    %v113 = vunpack.c.l.s8.bf16 %v85
    %v114 = vunpack.c.h.s8.bf16 %v84
    %v115 = vunpack.c.h.s8.bf16 %v85
    %v116 = vunpack.c.l.s8.bf16 %v86
    %v117 = vunpack.c.l.s8.bf16 %v87
    %v118 = vunpack.c.h.s8.bf16 %v86
    %v119 = vunpack.c.h.s8.bf16 %v87
    %v120 = vld [vmem:[#allocation5] sm:$0xf]
    %v121 = vld [vmem:[#allocation5 + $0x4] sm:$0xf]
    %v122 = vld [vmem:[#allocation5 + $0x8] sm:$0xf]
    %v123 = vld [vmem:[#allocation5 + $0xc] sm:$0xf]
    %v124 = vld [vmem:[#allocation5 + $0x10] sm:$0xf]
    %v125 = vld [vmem:[#allocation5 + $0x14] sm:$0xf]
    %v126 = vld [vmem:[#allocation5 + $0x18] sm:$0xf]
    %v127 = vld [vmem:[#allocation5 + $0x1c] sm:$0xf]
    %v128 = vld [vmem:[#allocation5 + $0x20] sm:$0xf]
    %v129 = vld [vmem:[#allocation5 + $0x24] sm:$0xf]
    %v130 = vld [vmem:[#allocation5 + $0x28] sm:$0xf]
    %v131 = vld [vmem:[#allocation5 + $0x2c] sm:$0xf]
    %v132 = vld [vmem:[#allocation5 + $0x30] sm:$0xf]
    %v133 = vld [vmem:[#allocation5 + $0x34] sm:$0xf]
    %v134 = vld [vmem:[#allocation5 + $0x38] sm:$0xf]
    %v135 = vld [vmem:[#allocation5 + $0x3c] sm:$0xf]
    %v136 = vld [vmem:[#allocation5 + $0x40] sm:$0xf]
    %v137 = vld [vmem:[#allocation5 + $0x44] sm:$0xf]
    %v138 = vld [vmem:[#allocation5 + $0x48] sm:$0xf]
    %v139 = vld [vmem:[#allocation5 + $0x4c] sm:$0xf]
    %v140 = vld [vmem:[#allocation5 + $0x50] sm:$0xf]
    %v141 = vld [vmem:[#allocation5 + $0x54] sm:$0xf]
    %v142 = vld [vmem:[#allocation5 + $0x58] sm:$0xf]
    %v143 = vld [vmem:[#allocation5 + $0x5c] sm:$0xf]
    %v144 = vld [vmem:[#allocation5 + $0x60] sm:$0xf]
    %v145 = vld [vmem:[#allocation5 + $0x64] sm:$0xf]
    %v146 = vld [vmem:[#allocation5 + $0x68] sm:$0xf]
    %v147 = vld [vmem:[#allocation5 + $0x6c] sm:$0xf]
    %v148 = vld [vmem:[#allocation5 + $0x70] sm:$0xf]
    %v149 = vld [vmem:[#allocation5 + $0x74] sm:$0xf]
    %v150 = vld [vmem:[#allocation5 + $0x78] sm:$0xf]
    %v151 = vld [vmem:[#allocation5 + $0x7c] sm:$0xf]
    %v184 = vunpack.c.l.b16 %v120
    %v185 = vunpack.c.l.b16 %v121
    %v186 = vunpack.c.l.b16 %v122
    %v187 = vunpack.c.l.b16 %v123
    %v188 = vunpack.c.l.b16 %v124
    %v189 = vunpack.c.l.b16 %v125
    %v190 = vunpack.c.l.b16 %v126
    %v191 = vunpack.c.l.b16 %v127
    %v192 = vunpack.c.l.b16 %v128
    %v193 = vunpack.c.l.b16 %v129
    %v194 = vunpack.c.l.b16 %v130
    %v195 = vunpack.c.l.b16 %v131
    %v196 = vunpack.c.l.b16 %v132
    %v197 = vunpack.c.l.b16 %v133
    %v198 = vunpack.c.l.b16 %v134
    %v199 = vunpack.c.l.b16 %v135
    %v200 = vunpack.c.l.b16 %v136
    %v201 = vunpack.c.l.b16 %v137
    %v202 = vunpack.c.l.b16 %v138
    %v203 = vunpack.c.l.b16 %v139
    %v204 = vunpack.c.l.b16 %v140
    %v205 = vunpack.c.l.b16 %v141
    %v206 = vunpack.c.l.b16 %v142
    %v207 = vunpack.c.l.b16 %v143
    %v208 = vunpack.c.l.b16 %v144
    %v209 = vunpack.c.l.b16 %v145
    %v210 = vunpack.c.l.b16 %v146
    %v211 = vunpack.c.l.b16 %v147
    %v212 = vunpack.c.l.b16 %v148
    %v213 = vunpack.c.l.b16 %v149
    %v214 = vunpack.c.l.b16 %v150
    %v215 = vunpack.c.l.b16 %v151
    %v216 = vpack.c.b16 %v185, %v184
    %v217 = vpack.c.b16 %v187, %v186
    %v218 = vpack.c.b16 %v189, %v188
    %v219 = vpack.c.b16 %v191, %v190
    %v220 = vpack.c.b16 %v193, %v192
    %v221 = vpack.c.b16 %v195, %v194
    %v222 = vpack.c.b16 %v197, %v196
    %v223 = vpack.c.b16 %v199, %v198
    %v224 = vpack.c.b16 %v201, %v200
    %v225 = vpack.c.b16 %v203, %v202
    %v226 = vpack.c.b16 %v205, %v204
    %v227 = vpack.c.b16 %v207, %v206
    %v228 = vpack.c.b16 %v209, %v208
    %v229 = vpack.c.b16 %v211, %v210
    %v230 = vpack.c.b16 %v213, %v212
    %v231 = vpack.c.b16 %v215, %v214
    %248 = vmatprep.subr.bf16.mxu0 0
    %249 = vmatpush1.bf16.msra.mxu0 %v216
    %250 = vmatprep.subr.bf16.mxu0 0
    %251 = vmatpush1.bf16.msra.mxu0 %v217
    %252 = vmatprep.subr.bf16.mxu0 0
    %253 = vmatpush1.bf16.msra.mxu0 %v218
    %254 = vmatprep.subr.bf16.mxu0 0
    %255 = vmatpush1.bf16.msra.mxu0 %v219
    %256 = vmatprep.subr.bf16.mxu0 0
    %257 = vmatpush1.bf16.msra.mxu0 %v220
    %258 = vmatprep.subr.bf16.mxu0 0
    %259 = vmatpush1.bf16.msra.mxu0 %v221
    %260 = vmatprep.subr.bf16.mxu0 0
    %261 = vmatpush1.bf16.msra.mxu0 %v222
    %262 = vmatprep.subr.bf16.mxu0 0
    %263 = vmatpush1.bf16.msra.mxu0 %v223
    %264 = vmatprep.subr.bf16.mxu0 0
    %265 = vmatpush1.bf16.msra.mxu0 %v224
    %266 = vmatprep.subr.bf16.mxu0 0
    %267 = vmatpush1.bf16.msra.mxu0 %v225
    %268 = vmatprep.subr.bf16.mxu0 0
    %269 = vmatpush1.bf16.msra.mxu0 %v226
    %270 = vmatprep.subr.bf16.mxu0 0
    %271 = vmatpush1.bf16.msra.mxu0 %v227
    %272 = vmatprep.subr.bf16.mxu0 0
    %273 = vmatpush1.bf16.msra.mxu0 %v228
    %274 = vmatprep.subr.bf16.mxu0 0
    %275 = vmatpush1.bf16.msra.mxu0 %v229
    %276 = vmatprep.subr.bf16.mxu0 0
    %277 = vmatpush1.bf16.msra.mxu0 %v230
    %278 = vmatprep.subr.bf16.mxu0 0
    %279 = vmatpush1.bf16.msra.mxu0 %v231
    %280 = vmatprep.mubr.bf16.mxu0 %v89
    %281 = vmatmul.mubr.bf16.gmra.mrb[0].mxu0 %v88
    %v282 = vpop.f32.mrb[0].mxu0
    %v283 = vadd.f32 0.0, %v282
    %v284 = vpop.f32.mrb[0].mxu0
    %v285 = vpop.f32.mrb[0].mxu0
    %v286 = vadd.f32 0.0, %v285
    %v287 = vpop.f32.mrb[0].mxu0
    %288 = vmatprep.mubr.bf16.mxu0 %v91
    %289 = vmatmul.mubr.bf16.gmra.mrb[0].mxu0 %v90
    %v290 = vpop.f32.mrb[0].mxu0
    %v291 = vadd.f32 0.0, %v290
    %v292 = vpop.f32.mrb[0].mxu0
    %v293 = vpop.f32.mrb[0].mxu0
    %v294 = vadd.f32 0.0, %v293
    %v295 = vpop.f32.mrb[0].mxu0
    %296 = vmatprep.mubr.bf16.mxu0 %v93
    %297 = vmatmul.mubr.bf16.gmra.mrb[0].mxu0 %v92
    %v298 = vpop.f32.mrb[0].mxu0
    %v299 = vadd.f32 0.0, %v298
    %v300 = vpop.f32.mrb[0].mxu0
    %v301 = vpop.f32.mrb[0].mxu0
    %v302 = vadd.f32 0.0, %v301
    %v303 = vpop.f32.mrb[0].mxu0
    %304 = vmatprep.mubr.bf16.mxu0 %v95
    %305 = vmatmul.mubr.bf16.gmra.mrb[0].mxu0 %v94
    %v306 = vpop.f32.mrb[0].mxu0
    %v307 = vadd.f32 0.0, %v306
    %v308 = vpop.f32.mrb[0].mxu0
    %v309 = vpop.f32.mrb[0].mxu0
    %v310 = vadd.f32 0.0, %v309
    %v311 = vpop.f32.mrb[0].mxu0
    %312 = vmatprep.mubr.bf16.mxu0 %v97
    %313 = vmatmul.mubr.bf16.gmra.mrb[0].mxu0 %v96
    %v314 = vpop.f32.mrb[0].mxu0
    %v315 = vadd.f32 0.0, %v314
    %v316 = vpop.f32.mrb[0].mxu0
    %v317 = vpop.f32.mrb[0].mxu0
    %v318 = vadd.f32 0.0, %v317
    %v319 = vpop.f32.mrb[0].mxu0
    %320 = vmatprep.mubr.bf16.mxu0 %v99
    %321 = vmatmul.mubr.bf16.gmra.mrb[0].mxu0 %v98
    %v322 = vpop.f32.mrb[0].mxu0
    %v323 = vadd.f32 0.0, %v322
    %v324 = vpop.f32.mrb[0].mxu0
    %v325 = vpop.f32.mrb[0].mxu0
    %v326 = vadd.f32 0.0, %v325
    %v327 = vpop.f32.mrb[0].mxu0
    %328 = vmatprep.mubr.bf16.mxu0 %v101
    %329 = vmatmul.mubr.bf16.gmra.mrb[0].mxu0 %v100
    %v330 = vpop.f32.mrb[0].mxu0
    %v331 = vadd.f32 0.0, %v330
    %v332 = vpop.f32.mrb[0].mxu0
    %v333 = vpop.f32.mrb[0].mxu0
    %v334 = vadd.f32 0.0, %v333
    %v335 = vpop.f32.mrb[0].mxu0
    %336 = vmatprep.mubr.bf16.mxu0 %v103
    %337 = vmatmul.mubr.bf16.gmra.mrb[0].mxu0 %v102
    %v338 = vpop.f32.mrb[0].mxu0
    %v339 = vadd.f32 0.0, %v338
    %v340 = vpop.f32.mrb[0].mxu0
    %v341 = vpop.f32.mrb[0].mxu0
    %v342 = vadd.f32 0.0, %v341
    %v343 = vpop.f32.mrb[0].mxu0
    %344 = vmatprep.mubr.bf16.mxu0 %v105
    %345 = vmatmul.mubr.bf16.gmra.mrb[0].mxu0 %v104
    %v346 = vpop.f32.mrb[0].mxu0
    %v347 = vadd.f32 0.0, %v346
    %v348 = vpop.f32.mrb[0].mxu0
    %v349 = vpop.f32.mrb[0].mxu0
    %v350 = vadd.f32 0.0, %v349
    %v351 = vpop.f32.mrb[0].mxu0
    %352 = vmatprep.mubr.bf16.mxu0 %v107
    %353 = vmatmul.mubr.bf16.gmra.mrb[0].mxu0 %v106
    %v354 = vpop.f32.mrb[0].mxu0
    %v355 = vadd.f32 0.0, %v354
    %v356 = vpop.f32.mrb[0].mxu0
    %v357 = vpop.f32.mrb[0].mxu0
    %v358 = vadd.f32 0.0, %v357
    %v359 = vpop.f32.mrb[0].mxu0
    %360 = vmatprep.mubr.bf16.mxu0 %v109
    %361 = vmatmul.mubr.bf16.gmra.mrb[0].mxu0 %v108
    %v362 = vpop.f32.mrb[0].mxu0
    %v363 = vadd.f32 0.0, %v362
    %v364 = vpop.f32.mrb[0].mxu0
    %v365 = vpop.f32.mrb[0].mxu0
    %v366 = vadd.f32 0.0, %v365
    %v367 = vpop.f32.mrb[0].mxu0
    %368 = vmatprep.mubr.bf16.mxu0 %v111
    %369 = vmatmul.mubr.bf16.gmra.mrb[0].mxu0 %v110
    %v370 = vpop.f32.mrb[0].mxu0
    %v371 = vadd.f32 0.0, %v370
    %v372 = vpop.f32.mrb[0].mxu0
    %v373 = vpop.f32.mrb[0].mxu0
    %v374 = vadd.f32 0.0, %v373
    %v375 = vpop.f32.mrb[0].mxu0
    %376 = vmatprep.mubr.bf16.mxu0 %v113
    %377 = vmatmul.mubr.bf16.gmra.mrb[0].mxu0 %v112
    %v378 = vpop.f32.mrb[0].mxu0
    %v379 = vadd.f32 0.0, %v378
    %v380 = vpop.f32.mrb[0].mxu0
    %v381 = vpop.f32.mrb[0].mxu0
    %v382 = vadd.f32 0.0, %v381
    %v383 = vpop.f32.mrb[0].mxu0
    %384 = vmatprep.mubr.bf16.mxu0 %v115
    %385 = vmatmul.mubr.bf16.gmra.mrb[0].mxu0 %v114
    %v386 = vpop.f32.mrb[0].mxu0
    %v387 = vadd.f32 0.0, %v386
    %v388 = vpop.f32.mrb[0].mxu0
    %v389 = vpop.f32.mrb[0].mxu0
    %v390 = vadd.f32 0.0, %v389
    %v391 = vpop.f32.mrb[0].mxu0
    %392 = vmatprep.mubr.bf16.mxu0 %v117
    %393 = vmatmul.mubr.bf16.gmra.mrb[0].mxu0 %v116
    %v394 = vpop.f32.mrb[0].mxu0
    %v395 = vadd.f32 0.0, %v394
    %v396 = vpop.f32.mrb[0].mxu0
    %v397 = vpop.f32.mrb[0].mxu0
    %v398 = vadd.f32 0.0, %v397
    %v399 = vpop.f32.mrb[0].mxu0
    %400 = vmatprep.mubr.bf16.mxu0 %v119
    %401 = vmatmul.mubr.bf16.gmra.mrb[0].mxu0 %v118
    %v402 = vpop.f32.mrb[0].mxu0
    %v403 = vadd.f32 0.0, %v402
    %v404 = vpop.f32.mrb[0].mxu0
    %v405 = vpop.f32.mrb[0].mxu0
    %v406 = vadd.f32 0.0, %v405
    %v407 = vpop.f32.mrb[0].mxu0
    %408 = vdwg.mxu0
    %v409 = vld [vmem:[#allocation7] sm:$0xff]
    %v410 = vld [vmem:[#allocation7 + $0x8] sm:$0xff]
    %v411 = vld [vmem:[#allocation7 + $0x10] sm:$0xff]
    %v412 = vld [vmem:[#allocation7 + $0x18] sm:$0xff]
    %v413 = vld [vmem:[#allocation7 + $0x20] sm:$0xff]
    %v414 = vld [vmem:[#allocation7 + $0x28] sm:$0xff]
    %v415 = vld [vmem:[#allocation7 + $0x30] sm:$0xff]
    %v416 = vld [vmem:[#allocation7 + $0x38] sm:$0xff]
    %v417 = vld [vmem:[#allocation7 + $0x40] sm:$0xff]
    %v418 = vld [vmem:[#allocation7 + $0x48] sm:$0xff]
    %v419 = vld [vmem:[#allocation7 + $0x50] sm:$0xff]
    %v420 = vld [vmem:[#allocation7 + $0x58] sm:$0xff]
    %v421 = vld [vmem:[#allocation7 + $0x60] sm:$0xff]
    %v422 = vld [vmem:[#allocation7 + $0x68] sm:$0xff]
    %v423 = vld [vmem:[#allocation7 + $0x70] sm:$0xff]
    %v424 = vld [vmem:[#allocation7 + $0x78] sm:$0xff]
    %v425 = vld [vmem:[#allocation7 + $0x80] sm:$0xff]
    %v426 = vld [vmem:[#allocation7 + $0x88] sm:$0xff]
    %v427 = vld [vmem:[#allocation7 + $0x90] sm:$0xff]
    %v428 = vld [vmem:[#allocation7 + $0x98] sm:$0xff]
    %v429 = vld [vmem:[#allocation7 + $0xa0] sm:$0xff]
    %v430 = vld [vmem:[#allocation7 + $0xa8] sm:$0xff]
    %v431 = vld [vmem:[#allocation7 + $0xb0] sm:$0xff]
    %v432 = vld [vmem:[#allocation7 + $0xb8] sm:$0xff]
    %v433 = vld [vmem:[#allocation7 + $0xc0] sm:$0xff]
    %v434 = vld [vmem:[#allocation7 + $0xc8] sm:$0xff]
    %v435 = vld [vmem:[#allocation7 + $0xd0] sm:$0xff]
    %v436 = vld [vmem:[#allocation7 + $0xd8] sm:$0xff]
    %v437 = vld [vmem:[#allocation7 + $0xe0] sm:$0xff]
    %v438 = vld [vmem:[#allocation7 + $0xe8] sm:$0xff]
    %v439 = vld [vmem:[#allocation7 + $0xf0] sm:$0xff]
    %v440 = vld [vmem:[#allocation7 + $0xf8] sm:$0xff]
    %442 = vset.pattern.permute.xlu0 0
    %443 = vperm.xlu0 %442, %v409
    %v444 = vpop.permute.xlu0 %443
    %447 = vset.pattern.permute.xlu0 0
    %448 = vperm.xlu0 %447, %v410
    %v449 = vpop.permute.xlu0 %448
    %452 = vset.pattern.permute.xlu0 0
    %453 = vperm.xlu0 %452, %v411
    %v454 = vpop.permute.xlu0 %453
    %457 = vset.pattern.permute.xlu0 0
    %458 = vperm.xlu0 %457, %v412
    %v459 = vpop.permute.xlu0 %458
    %462 = vset.pattern.permute.xlu0 0
    %463 = vperm.xlu0 %462, %v413
    %v464 = vpop.permute.xlu0 %463
    %467 = vset.pattern.permute.xlu0 0
    %468 = vperm.xlu0 %467, %v414
    %v469 = vpop.permute.xlu0 %468
    %472 = vset.pattern.permute.xlu0 0
    %473 = vperm.xlu0 %472, %v415
    %v474 = vpop.permute.xlu0 %473
    %477 = vset.pattern.permute.xlu0 0
    %478 = vperm.xlu0 %477, %v416
    %v479 = vpop.permute.xlu0 %478
    %482 = vset.pattern.permute.xlu0 0
    %483 = vperm.xlu0 %482, %v417
    %v484 = vpop.permute.xlu0 %483
    %487 = vset.pattern.permute.xlu0 0
    %488 = vperm.xlu0 %487, %v418
    %v489 = vpop.permute.xlu0 %488
    %492 = vset.pattern.permute.xlu0 0
    %493 = vperm.xlu0 %492, %v419
    %v494 = vpop.permute.xlu0 %493
    %497 = vset.pattern.permute.xlu0 0
    %498 = vperm.xlu0 %497, %v420
    %v499 = vpop.permute.xlu0 %498
    %502 = vset.pattern.permute.xlu0 0
    %503 = vperm.xlu0 %502, %v421
    %v504 = vpop.permute.xlu0 %503
    %507 = vset.pattern.permute.xlu0 0
    %508 = vperm.xlu0 %507, %v422
    %v509 = vpop.permute.xlu0 %508
    %512 = vset.pattern.permute.xlu0 0
    %513 = vperm.xlu0 %512, %v423
    %v514 = vpop.permute.xlu0 %513
    %517 = vset.pattern.permute.xlu0 0
    %518 = vperm.xlu0 %517, %v424
    %v519 = vpop.permute.xlu0 %518
    %522 = vset.pattern.permute.xlu0 0
    %523 = vperm.xlu0 %522, %v425
    %v524 = vpop.permute.xlu0 %523
    %527 = vset.pattern.permute.xlu0 0
    %528 = vperm.xlu0 %527, %v426
    %v529 = vpop.permute.xlu0 %528
    %532 = vset.pattern.permute.xlu0 0
    %533 = vperm.xlu0 %532, %v427
    %v534 = vpop.permute.xlu0 %533
    %537 = vset.pattern.permute.xlu0 0
    %538 = vperm.xlu0 %537, %v428
    %v539 = vpop.permute.xlu0 %538
    %542 = vset.pattern.permute.xlu0 0
    %543 = vperm.xlu0 %542, %v429
    %v544 = vpop.permute.xlu0 %543
    %547 = vset.pattern.permute.xlu0 0
    %548 = vperm.xlu0 %547, %v430
    %v549 = vpop.permute.xlu0 %548
    %552 = vset.pattern.permute.xlu0 0
    %553 = vperm.xlu0 %552, %v431
    %v554 = vpop.permute.xlu0 %553
    %557 = vset.pattern.permute.xlu0 0
    %558 = vperm.xlu0 %557, %v432
    %v559 = vpop.permute.xlu0 %558
    %562 = vset.pattern.permute.xlu0 0
    %563 = vperm.xlu0 %562, %v433
    %v564 = vpop.permute.xlu0 %563
    %567 = vset.pattern.permute.xlu0 0
    %568 = vperm.xlu0 %567, %v434
    %v569 = vpop.permute.xlu0 %568
    %572 = vset.pattern.permute.xlu0 0
    %573 = vperm.xlu0 %572, %v435
    %v574 = vpop.permute.xlu0 %573
    %577 = vset.pattern.permute.xlu0 0
    %578 = vperm.xlu0 %577, %v436
    %v579 = vpop.permute.xlu0 %578
    %582 = vset.pattern.permute.xlu0 0
    %583 = vperm.xlu0 %582, %v437
    %v584 = vpop.permute.xlu0 %583
    %587 = vset.pattern.permute.xlu0 0
    %588 = vperm.xlu0 %587, %v438
    %v589 = vpop.permute.xlu0 %588
    %592 = vset.pattern.permute.xlu0 0
    %593 = vperm.xlu0 %592, %v439
    %v594 = vpop.permute.xlu0 %593
    %597 = vset.pattern.permute.xlu0 0
    %598 = vperm.xlu0 %597, %v440
    %v599 = vpop.permute.xlu0 %598
    %v601 = vmul.f32 %v283, %v444
    %v602 = vmul.f32 %v286, %v449
    %v603 = vmul.f32 %v291, %v454
    %v604 = vmul.f32 %v294, %v459
    %v605 = vmul.f32 %v299, %v464
    %v606 = vmul.f32 %v302, %v469
    %v607 = vmul.f32 %v307, %v474
    %v608 = vmul.f32 %v310, %v479
    %v609 = vmul.f32 %v315, %v484
    %v610 = vmul.f32 %v318, %v489
    %v611 = vmul.f32 %v323, %v494
    %v612 = vmul.f32 %v326, %v499
    %v613 = vmul.f32 %v331, %v504
    %v614 = vmul.f32 %v334, %v509
    %v615 = vmul.f32 %v339, %v514
    %v616 = vmul.f32 %v342, %v519
    %v617 = vmul.f32 %v347, %v524
    %v618 = vmul.f32 %v350, %v529
    %v619 = vmul.f32 %v355, %v534
    %v620 = vmul.f32 %v358, %v539
    %v621 = vmul.f32 %v363, %v544
    %v622 = vmul.f32 %v366, %v549
    %v623 = vmul.f32 %v371, %v554
    %v624 = vmul.f32 %v374, %v559
    %v625 = vmul.f32 %v379, %v564
    %v626 = vmul.f32 %v382, %v569
    %v627 = vmul.f32 %v387, %v574
    %v628 = vmul.f32 %v390, %v579
    %v629 = vmul.f32 %v395, %v584
    %v630 = vmul.f32 %v398, %v589
    %v631 = vmul.f32 %v403, %v594
    %v632 = vmul.f32 %v406, %v599
    %v633 = vld [vmem:[#allocation8] sm:$0x1]
    %v635 = vlaneseq
    %v636 = vshrl.u32 %v635, 7
    %v637 = vsub.s32 0, %v636
    %v638 = vrot.slane %v633, %v637
    %v640 = vadd.f32 %v601, %v638
    %v641 = vadd.f32 %v602, %v638
    %v642 = vadd.f32 %v603, %v638
    %v643 = vadd.f32 %v604, %v638
    %v644 = vadd.f32 %v605, %v638
    %v645 = vadd.f32 %v606, %v638
    %v646 = vadd.f32 %v607, %v638
    %v647 = vadd.f32 %v608, %v638
    %v648 = vadd.f32 %v609, %v638
    %v649 = vadd.f32 %v610, %v638
    %v650 = vadd.f32 %v611, %v638
    %v651 = vadd.f32 %v612, %v638
    %v652 = vadd.f32 %v613, %v638
    %v653 = vadd.f32 %v614, %v638
    %v654 = vadd.f32 %v615, %v638
    %v655 = vadd.f32 %v616, %v638
    %v656 = vadd.f32 %v617, %v638
    %v657 = vadd.f32 %v618, %v638
    %v658 = vadd.f32 %v619, %v638
    %v659 = vadd.f32 %v620, %v638
    %v660 = vadd.f32 %v621, %v638
    %v661 = vadd.f32 %v622, %v638
    %v662 = vadd.f32 %v623, %v638
    %v663 = vadd.f32 %v624, %v638
    %v664 = vadd.f32 %v625, %v638
    %v665 = vadd.f32 %v626, %v638
    %v666 = vadd.f32 %v627, %v638
    %v667 = vadd.f32 %v628, %v638
    %v668 = vadd.f32 %v629, %v638
    %v669 = vadd.f32 %v630, %v638
    %v670 = vadd.f32 %v631, %v638
    %v671 = vadd.f32 %v632, %v638
    %v672 = vlaneseq
    %v673 = vand.u32 %v672, 127
    %vm674 = vcmp.lt.s32.totalorder %v673, 4
    %v675 = vsel %vm674, %v640, -inf
    %v676 = vsel %vm674, %v641, -inf
    %v677 = vsel %vm674, %v642, -inf
    %v678 = vsel %vm674, %v643, -inf
    %v679 = vsel %vm674, %v644, -inf
    %v680 = vsel %vm674, %v645, -inf
    %v681 = vsel %vm674, %v646, -inf
    %v682 = vsel %vm674, %v647, -inf
    %v683 = vsel %vm674, %v648, -inf
    %v684 = vsel %vm674, %v649, -inf
    %v685 = vsel %vm674, %v650, -inf
    %v686 = vsel %vm674, %v651, -inf
    %v687 = vsel %vm674, %v652, -inf
    %v688 = vsel %vm674, %v653, -inf
    %v689 = vsel %vm674, %v654, -inf
    %v690 = vsel %vm674, %v655, -inf
    %v691 = vsel %vm674, %v656, -inf
    %v692 = vsel %vm674, %v657, -inf
    %v693 = vsel %vm674, %v658, -inf
    %v694 = vsel %vm674, %v659, -inf
    %v695 = vsel %vm674, %v660, -inf
    %v696 = vsel %vm674, %v661, -inf
    %v697 = vsel %vm674, %v662, -inf
    %v698 = vsel %vm674, %v663, -inf
    %v699 = vsel %vm674, %v664, -inf
    %v700 = vsel %vm674, %v665, -inf
    %v701 = vsel %vm674, %v666, -inf
    %v702 = vsel %vm674, %v667, -inf
    %v703 = vsel %vm674, %v668, -inf
    %v704 = vsel %vm674, %v669, -inf
    %v705 = vsel %vm674, %v670, -inf
    %v706 = vsel %vm674, %v671, -inf
    %707 = vmax.xlane.f32.xlu0 %v675
    %v708 = vpop.xlane.xlu0 %707
    %709 = vmax.xlane.f32.xlu0 %v676
    %v710 = vpop.xlane.xlu0 %709
    %711 = vmax.xlane.f32.xlu0 %v677
    %v712 = vpop.xlane.xlu0 %711
    %713 = vmax.xlane.f32.xlu0 %v678
    %v714 = vpop.xlane.xlu0 %713
    %715 = vmax.xlane.f32.xlu0 %v679
    %v716 = vpop.xlane.xlu0 %715
    %717 = vmax.xlane.f32.xlu0 %v680
    %v718 = vpop.xlane.xlu0 %717
    %719 = vmax.xlane.f32.xlu0 %v681
    %v720 = vpop.xlane.xlu0 %719
    %721 = vmax.xlane.f32.xlu0 %v682
    %v722 = vpop.xlane.xlu0 %721
    %723 = vmax.xlane.f32.xlu0 %v683
    %v724 = vpop.xlane.xlu0 %723
    %725 = vmax.xlane.f32.xlu0 %v684
    %v726 = vpop.xlane.xlu0 %725
    %727 = vmax.xlane.f32.xlu0 %v685
    %v728 = vpop.xlane.xlu0 %727
    %729 = vmax.xlane.f32.xlu0 %v686
    %v730 = vpop.xlane.xlu0 %729
    %731 = vmax.xlane.f32.xlu0 %v687
    %v732 = vpop.xlane.xlu0 %731
    %733 = vmax.xlane.f32.xlu0 %v688
    %v734 = vpop.xlane.xlu0 %733
    %735 = vmax.xlane.f32.xlu0 %v689
    %v736 = vpop.xlane.xlu0 %735
    %737 = vmax.xlane.f32.xlu0 %v690
    %v738 = vpop.xlane.xlu0 %737
    %739 = vmax.xlane.f32.xlu0 %v691
    %v740 = vpop.xlane.xlu0 %739
    %741 = vmax.xlane.f32.xlu0 %v692
    %v742 = vpop.xlane.xlu0 %741
    %743 = vmax.xlane.f32.xlu0 %v693
    %v744 = vpop.xlane.xlu0 %743
    %745 = vmax.xlane.f32.xlu0 %v694
    %v746 = vpop.xlane.xlu0 %745
    %747 = vmax.xlane.f32.xlu0 %v695
    %v748 = vpop.xlane.xlu0 %747
    %749 = vmax.xlane.f32.xlu0 %v696
    %v750 = vpop.xlane.xlu0 %749
    %751 = vmax.xlane.f32.xlu0 %v697
    %v752 = vpop.xlane.xlu0 %751
    %753 = vmax.xlane.f32.xlu0 %v698
    %v754 = vpop.xlane.xlu0 %753
    %755 = vmax.xlane.f32.xlu0 %v699
    %v756 = vpop.xlane.xlu0 %755
    %757 = vmax.xlane.f32.xlu0 %v700
    %v758 = vpop.xlane.xlu0 %757
    %759 = vmax.xlane.f32.xlu0 %v701
    %v760 = vpop.xlane.xlu0 %759
    %761 = vmax.xlane.f32.xlu0 %v702
    %v762 = vpop.xlane.xlu0 %761
    %763 = vmax.xlane.f32.xlu0 %v703
    %v764 = vpop.xlane.xlu0 %763
    %765 = vmax.xlane.f32.xlu0 %v704
    %v766 = vpop.xlane.xlu0 %765
    %767 = vmax.xlane.f32.xlu0 %v705
    %v768 = vpop.xlane.xlu0 %767
    %769 = vmax.xlane.f32.xlu0 %v706
    %v770 = vpop.xlane.xlu0 %769
    %v771 = vsub.f32 %v640, %v708
    %v772 = vsub.f32 %v641, %v710
    %v773 = vsub.f32 %v642, %v712
    %v774 = vsub.f32 %v643, %v714
    %v775 = vsub.f32 %v644, %v716
    %v776 = vsub.f32 %v645, %v718
    %v777 = vsub.f32 %v646, %v720
    %v778 = vsub.f32 %v647, %v722
    %v779 = vsub.f32 %v648, %v724
    %v780 = vsub.f32 %v649, %v726
    %v781 = vsub.f32 %v650, %v728
    %v782 = vsub.f32 %v651, %v730
    %v783 = vsub.f32 %v652, %v732
    %v784 = vsub.f32 %v653, %v734
    %v785 = vsub.f32 %v654, %v736
    %v786 = vsub.f32 %v655, %v738
    %v787 = vsub.f32 %v656, %v740
    %v788 = vsub.f32 %v657, %v742
    %v789 = vsub.f32 %v658, %v744
    %v790 = vsub.f32 %v659, %v746
    %v791 = vsub.f32 %v660, %v748
    %v792 = vsub.f32 %v661, %v750
    %v793 = vsub.f32 %v662, %v752
    %v794 = vsub.f32 %v663, %v754
    %v795 = vsub.f32 %v664, %v756
    %v796 = vsub.f32 %v665, %v758
    %v797 = vsub.f32 %v666, %v760
    %v798 = vsub.f32 %v667, %v762
    %v799 = vsub.f32 %v668, %v764
    %v800 = vsub.f32 %v669, %v766
    %v801 = vsub.f32 %v670, %v768
    %v802 = vsub.f32 %v671, %v770
    %v803 = vmul.f32 %v771, 1.442695
    %v804 = vpow.pop %v803
    %v805 = vmul.f32 %v772, 1.442695
    %v806 = vpow.pop %v805
    %v807 = vmul.f32 %v773, 1.442695
    %v808 = vpow.pop %v807
    %v809 = vmul.f32 %v774, 1.442695
    %v810 = vpow.pop %v809
    %v811 = vmul.f32 %v775, 1.442695
    %v812 = vpow.pop %v811
    %v813 = vmul.f32 %v776, 1.442695
    %v814 = vpow.pop %v813
    %v815 = vmul.f32 %v777, 1.442695
    %v816 = vpow.pop %v815
    %v817 = vmul.f32 %v778, 1.442695
    %v818 = vpow.pop %v817
    %v819 = vmul.f32 %v779, 1.442695
    %v820 = vpow.pop %v819
    %v821 = vmul.f32 %v780, 1.442695
    %v822 = vpow.pop %v821
    %v823 = vmul.f32 %v781, 1.442695
    %v824 = vpow.pop %v823
    %v825 = vmul.f32 %v782, 1.442695
    %v826 = vpow.pop %v825
    %v827 = vmul.f32 %v783, 1.442695
    %v828 = vpow.pop %v827
    %v829 = vmul.f32 %v784, 1.442695
    %v830 = vpow.pop %v829
    %v831 = vmul.f32 %v785, 1.442695
    %v832 = vpow.pop %v831
    %v833 = vmul.f32 %v786, 1.442695
    %v834 = vpow.pop %v833
    %v835 = vmul.f32 %v787, 1.442695
    %v836 = vpow.pop %v835
    %v837 = vmul.f32 %v788, 1.442695
    %v838 = vpow.pop %v837
    %v839 = vmul.f32 %v789, 1.442695
    %v840 = vpow.pop %v839
    %v841 = vmul.f32 %v790, 1.442695
    %v842 = vpow.pop %v841
    %v843 = vmul.f32 %v791, 1.442695
    %v844 = vpow.pop %v843
    %v845 = vmul.f32 %v792, 1.442695
    %v846 = vpow.pop %v845
    %v847 = vmul.f32 %v793, 1.442695
    %v848 = vpow.pop %v847
    %v849 = vmul.f32 %v794, 1.442695
    %v850 = vpow.pop %v849
    %v851 = vmul.f32 %v795, 1.442695
    %v852 = vpow.pop %v851
    %v853 = vmul.f32 %v796, 1.442695
    %v854 = vpow.pop %v853
    %v855 = vmul.f32 %v797, 1.442695
    %v856 = vpow.pop %v855
    %v857 = vmul.f32 %v798, 1.442695
    %v858 = vpow.pop %v857
    %v859 = vmul.f32 %v799, 1.442695
    %v860 = vpow.pop %v859
    %v861 = vmul.f32 %v800, 1.442695
    %v862 = vpow.pop %v861
    %v863 = vmul.f32 %v801, 1.442695
    %v864 = vpow.pop %v863
    %v865 = vmul.f32 %v802, 1.442695
    %v866 = vpow.pop %v865
    %v867 = vsel %vm674, %v804, 0.0
    %v868 = vsel %vm674, %v806, 0.0
    %v869 = vsel %vm674, %v808, 0.0
    %v870 = vsel %vm674, %v810, 0.0
    %v871 = vsel %vm674, %v812, 0.0
    %v872 = vsel %vm674, %v814, 0.0
    %v873 = vsel %vm674, %v816, 0.0
    %v874 = vsel %vm674, %v818, 0.0
    %v875 = vsel %vm674, %v820, 0.0
    %v876 = vsel %vm674, %v822, 0.0
    %v877 = vsel %vm674, %v824, 0.0
    %v878 = vsel %vm674, %v826, 0.0
    %v879 = vsel %vm674, %v828, 0.0
    %v880 = vsel %vm674, %v830, 0.0
    %v881 = vsel %vm674, %v832, 0.0
    %v882 = vsel %vm674, %v834, 0.0
    %v883 = vsel %vm674, %v836, 0.0
    %v884 = vsel %vm674, %v838, 0.0
    %v885 = vsel %vm674, %v840, 0.0
    %v886 = vsel %vm674, %v842, 0.0
    %v887 = vsel %vm674, %v844, 0.0
    %v888 = vsel %vm674, %v846, 0.0
    %v889 = vsel %vm674, %v848, 0.0
    %v890 = vsel %vm674, %v850, 0.0
    %v891 = vsel %vm674, %v852, 0.0
    %v892 = vsel %vm674, %v854, 0.0
    %v893 = vsel %vm674, %v856, 0.0
    %v894 = vsel %vm674, %v858, 0.0
    %v895 = vsel %vm674, %v860, 0.0
    %v896 = vsel %vm674, %v862, 0.0
    %v897 = vsel %vm674, %v864, 0.0
    %v898 = vsel %vm674, %v866, 0.0
    %899 = vadd.xlane.f32.xlu0 %v867
    %v900 = vpop.xlane.xlu0 %899
    %901 = vadd.xlane.f32.xlu0 %v868
    %v902 = vpop.xlane.xlu0 %901
    %903 = vadd.xlane.f32.xlu0 %v869
    %v904 = vpop.xlane.xlu0 %903
    %905 = vadd.xlane.f32.xlu0 %v870
    %v906 = vpop.xlane.xlu0 %905
    %907 = vadd.xlane.f32.xlu0 %v871
    %v908 = vpop.xlane.xlu0 %907
    %909 = vadd.xlane.f32.xlu0 %v872
    %v910 = vpop.xlane.xlu0 %909
    %911 = vadd.xlane.f32.xlu0 %v873
    %v912 = vpop.xlane.xlu0 %911
    %913 = vadd.xlane.f32.xlu0 %v874
    %v914 = vpop.xlane.xlu0 %913
    %915 = vadd.xlane.f32.xlu0 %v875
    %v916 = vpop.xlane.xlu0 %915
    %917 = vadd.xlane.f32.xlu0 %v876
    %v918 = vpop.xlane.xlu0 %917
    %919 = vadd.xlane.f32.xlu0 %v877
    %v920 = vpop.xlane.xlu0 %919
    %921 = vadd.xlane.f32.xlu0 %v878
    %v922 = vpop.xlane.xlu0 %921
    %923 = vadd.xlane.f32.xlu0 %v879
    %v924 = vpop.xlane.xlu0 %923
    %925 = vadd.xlane.f32.xlu0 %v880
    %v926 = vpop.xlane.xlu0 %925
    %927 = vadd.xlane.f32.xlu0 %v881
    %v928 = vpop.xlane.xlu0 %927
    %929 = vadd.xlane.f32.xlu0 %v882
    %v930 = vpop.xlane.xlu0 %929
    %931 = vadd.xlane.f32.xlu0 %v883
    %v932 = vpop.xlane.xlu0 %931
    %933 = vadd.xlane.f32.xlu0 %v884
    %v934 = vpop.xlane.xlu0 %933
    %935 = vadd.xlane.f32.xlu0 %v885
    %v936 = vpop.xlane.xlu0 %935
    %937 = vadd.xlane.f32.xlu0 %v886
    %v938 = vpop.xlane.xlu0 %937
    %939 = vadd.xlane.f32.xlu0 %v887
    %v940 = vpop.xlane.xlu0 %939
    %941 = vadd.xlane.f32.xlu0 %v888
    %v942 = vpop.xlane.xlu0 %941
    %943 = vadd.xlane.f32.xlu0 %v889
    %v944 = vpop.xlane.xlu0 %943
    %945 = vadd.xlane.f32.xlu0 %v890
    %v946 = vpop.xlane.xlu0 %945
    %947 = vadd.xlane.f32.xlu0 %v891
    %v948 = vpop.xlane.xlu0 %947
    %949 = vadd.xlane.f32.xlu0 %v892
    %v950 = vpop.xlane.xlu0 %949
    %951 = vadd.xlane.f32.xlu0 %v893
    %v952 = vpop.xlane.xlu0 %951
    %953 = vadd.xlane.f32.xlu0 %v894
    %v954 = vpop.xlane.xlu0 %953
    %955 = vadd.xlane.f32.xlu0 %v895
    %v956 = vpop.xlane.xlu0 %955
    %957 = vadd.xlane.f32.xlu0 %v896
    %v958 = vpop.xlane.xlu0 %957
    %959 = vadd.xlane.f32.xlu0 %v897
    %v960 = vpop.xlane.xlu0 %959
    %961 = vadd.xlane.f32.xlu0 %v898
    %v962 = vpop.xlane.xlu0 %961
    %v963 = vlog2.pop %v900
    %v964 = vmul.f32 %v963, 0.6931472
    %v965 = vlog2.pop %v902
    %v966 = vmul.f32 %v965, 0.6931472
    %v967 = vlog2.pop %v904
    %v968 = vmul.f32 %v967, 0.6931472
    %v969 = vlog2.pop %v906
    %v970 = vmul.f32 %v969, 0.6931472
    %v971 = vlog2.pop %v908
    %v972 = vmul.f32 %v971, 0.6931472
    %v973 = vlog2.pop %v910
    %v974 = vmul.f32 %v973, 0.6931472
    %v975 = vlog2.pop %v912
    %v976 = vmul.f32 %v975, 0.6931472
    %v977 = vlog2.pop %v914
    %v978 = vmul.f32 %v977, 0.6931472
    %v979 = vlog2.pop %v916
    %v980 = vmul.f32 %v979, 0.6931472
    %v981 = vlog2.pop %v918
    %v982 = vmul.f32 %v981, 0.6931472
    %v983 = vlog2.pop %v920
    %v984 = vmul.f32 %v983, 0.6931472
    %v985 = vlog2.pop %v922
    %v986 = vmul.f32 %v985, 0.6931472
    %v987 = vlog2.pop %v924
    %v988 = vmul.f32 %v987, 0.6931472
    %v989 = vlog2.pop %v926
    %v990 = vmul.f32 %v989, 0.6931472
    %v991 = vlog2.pop %v928
    %v992 = vmul.f32 %v991, 0.6931472
    %v993 = vlog2.pop %v930
    %v994 = vmul.f32 %v993, 0.6931472
    %v995 = vlog2.pop %v932
    %v996 = vmul.f32 %v995, 0.6931472
    %v997 = vlog2.pop %v934
    %v998 = vmul.f32 %v997, 0.6931472
    %v999 = vlog2.pop %v936
    %v1000 = vmul.f32 %v999, 0.6931472
    %v1001 = vlog2.pop %v938
    %v1002 = vmul.f32 %v1001, 0.6931472
    %v1003 = vlog2.pop %v940
    %v1004 = vmul.f32 %v1003, 0.6931472
    %v1005 = vlog2.pop %v942
    %v1006 = vmul.f32 %v1005, 0.6931472
    %v1007 = vlog2.pop %v944
    %v1008 = vmul.f32 %v1007, 0.6931472
    %v1009 = vlog2.pop %v946
    %v1010 = vmul.f32 %v1009, 0.6931472
    %v1011 = vlog2.pop %v948
    %v1012 = vmul.f32 %v1011, 0.6931472
    %v1013 = vlog2.pop %v950
    %v1014 = vmul.f32 %v1013, 0.6931472
    %v1015 = vlog2.pop %v952
    %v1016 = vmul.f32 %v1015, 0.6931472
    %v1017 = vlog2.pop %v954
    %v1018 = vmul.f32 %v1017, 0.6931472
    %v1019 = vlog2.pop %v956
    %v1020 = vmul.f32 %v1019, 0.6931472
    %v1021 = vlog2.pop %v958
    %v1022 = vmul.f32 %v1021, 0.6931472
    %v1023 = vlog2.pop %v960
    %v1024 = vmul.f32 %v1023, 0.6931472
    %v1025 = vlog2.pop %v962
    %v1026 = vmul.f32 %v1025, 0.6931472
    %v1027 = vadd.f32 %v708, %v964
    %v1028 = vadd.f32 %v710, %v966
    %v1029 = vadd.f32 %v712, %v968
    %v1030 = vadd.f32 %v714, %v970
    %v1031 = vadd.f32 %v716, %v972
    %v1032 = vadd.f32 %v718, %v974
    %v1033 = vadd.f32 %v720, %v976
    %v1034 = vadd.f32 %v722, %v978
    %v1035 = vadd.f32 %v724, %v980
    %v1036 = vadd.f32 %v726, %v982
    %v1037 = vadd.f32 %v728, %v984
    %v1038 = vadd.f32 %v730, %v986
    %v1039 = vadd.f32 %v732, %v988
    %v1040 = vadd.f32 %v734, %v990
    %v1041 = vadd.f32 %v736, %v992
    %v1042 = vadd.f32 %v738, %v994
    %v1043 = vadd.f32 %v740, %v996
    %v1044 = vadd.f32 %v742, %v998
    %v1045 = vadd.f32 %v744, %v1000
    %v1046 = vadd.f32 %v746, %v1002
    %v1047 = vadd.f32 %v748, %v1004
    %v1048 = vadd.f32 %v750, %v1006
    %v1049 = vadd.f32 %v752, %v1008
    %v1050 = vadd.f32 %v754, %v1010
    %v1051 = vadd.f32 %v756, %v1012
    %v1052 = vadd.f32 %v758, %v1014
    %v1053 = vadd.f32 %v760, %v1016
    %v1054 = vadd.f32 %v762, %v1018
    %v1055 = vadd.f32 %v764, %v1020
    %v1056 = vadd.f32 %v766, %v1022
    %v1057 = vadd.f32 %v768, %v1024
    %v1058 = vadd.f32 %v770, %v1026
    %v1059 = vsub.f32 %v640, %v1027
    %v1060 = vsub.f32 %v641, %v1028
    %v1061 = vsub.f32 %v642, %v1029
    %v1062 = vsub.f32 %v643, %v1030
    %v1063 = vsub.f32 %v644, %v1031
    %v1064 = vsub.f32 %v645, %v1032
    %v1065 = vsub.f32 %v646, %v1033
    %v1066 = vsub.f32 %v647, %v1034
    %v1067 = vsub.f32 %v648, %v1035
    %v1068 = vsub.f32 %v649, %v1036
    %v1069 = vsub.f32 %v650, %v1037
    %v1070 = vsub.f32 %v651, %v1038
    %v1071 = vsub.f32 %v652, %v1039
    %v1072 = vsub.f32 %v653, %v1040
    %v1073 = vsub.f32 %v654, %v1041
    %v1074 = vsub.f32 %v655, %v1042
    %v1075 = vsub.f32 %v656, %v1043
    %v1076 = vsub.f32 %v657, %v1044
    %v1077 = vsub.f32 %v658, %v1045
    %v1078 = vsub.f32 %v659, %v1046
    %v1079 = vsub.f32 %v660, %v1047
    %v1080 = vsub.f32 %v661, %v1048
    %v1081 = vsub.f32 %v662, %v1049
    %v1082 = vsub.f32 %v663, %v1050
    %v1083 = vsub.f32 %v664, %v1051
    %v1084 = vsub.f32 %v665, %v1052
    %v1085 = vsub.f32 %v666, %v1053
    %v1086 = vsub.f32 %v667, %v1054
    %v1087 = vsub.f32 %v668, %v1055
    %v1088 = vsub.f32 %v669, %v1056
    %v1089 = vsub.f32 %v670, %v1057
    %v1090 = vsub.f32 %v671, %v1058
    %1091 = vst [vmem:[#allocation10] sm:$0xff] %v1059
    %1092 = vst [vmem:[#allocation10 + $0x8] sm:$0xff] %v1060
    %1093 = vst [vmem:[#allocation10 + $0x10] sm:$0xff] %v1061
    %1094 = vst [vmem:[#allocation10 + $0x18] sm:$0xff] %v1062
    %1095 = vst [vmem:[#allocation10 + $0x20] sm:$0xff] %v1063
    %1096 = vst [vmem:[#allocation10 + $0x28] sm:$0xff] %v1064
    %1097 = vst [vmem:[#allocation10 + $0x30] sm:$0xff] %v1065
    %1098 = vst [vmem:[#allocation10 + $0x38] sm:$0xff] %v1066
    %1099 = vst [vmem:[#allocation10 + $0x40] sm:$0xff] %v1067
    %1100 = vst [vmem:[#allocation10 + $0x48] sm:$0xff] %v1068
    %1101 = vst [vmem:[#allocation10 + $0x50] sm:$0xff] %v1069
    %1102 = vst [vmem:[#allocation10 + $0x58] sm:$0xff] %v1070
    %1103 = vst [vmem:[#allocation10 + $0x60] sm:$0xff] %v1071
    %1104 = vst [vmem:[#allocation10 + $0x68] sm:$0xff] %v1072
    %1105 = vst [vmem:[#allocation10 + $0x70] sm:$0xff] %v1073
    %1106 = vst [vmem:[#allocation10 + $0x78] sm:$0xff] %v1074
    %1107 = vst [vmem:[#allocation10 + $0x80] sm:$0xff] %v1075
    %1108 = vst [vmem:[#allocation10 + $0x88] sm:$0xff] %v1076
    %1109 = vst [vmem:[#allocation10 + $0x90] sm:$0xff] %v1077
    %1110 = vst [vmem:[#allocation10 + $0x98] sm:$0xff] %v1078
    %1111 = vst [vmem:[#allocation10 + $0xa0] sm:$0xff] %v1079
    %1112 = vst [vmem:[#allocation10 + $0xa8] sm:$0xff] %v1080
    %1113 = vst [vmem:[#allocation10 + $0xb0] sm:$0xff] %v1081
    %1114 = vst [vmem:[#allocation10 + $0xb8] sm:$0xff] %v1082
    %1115 = vst [vmem:[#allocation10 + $0xc0] sm:$0xff] %v1083
    %1116 = vst [vmem:[#allocation10 + $0xc8] sm:$0xff] %v1084
    %1117 = vst [vmem:[#allocation10 + $0xd0] sm:$0xff] %v1085
    %1118 = vst [vmem:[#allocation10 + $0xd8] sm:$0xff] %v1086
    %1119 = vst [vmem:[#allocation10 + $0xe0] sm:$0xff] %v1087
    %1120 = vst [vmem:[#allocation10 + $0xe8] sm:$0xff] %v1088
    %1121 = vst [vmem:[#allocation10 + $0xf0] sm:$0xff] %v1089
    %1122 = vst [vmem:[#allocation10 + $0xf8] sm:$0xff] %v1090
    // Predicated region
    $region34: #{gcn_forward.3} parent=1 // pred_check
      _
    $region35: #{gcn_forward.3} parent=1 // pred_check_branch
      %1124 = sbr.rel (0) target = $region37
    $region36: #{gcn_forward.3} parent=1 // pred_region
      %s1126 = ssub.s32 4096, 4096
      %1127 = vsyncadd [#allocation4], %s1126
      %s1128 = sshll.u32 [#allocation10], 4
      %s1129 = int_to_ptr.vmem [resolvable:$true] %s1128
      %1134 = dma.vmem_to_hbm [thread:$0]  %s1129, 4096, %s4, [#allocation4], 128, 128, 8
    $region37: #{gcn_forward.3} parent=1 // pred_fallthru
      _
    // Predicated region
    $region38: #{gcn_forward.3} parent=1 // pred_check
      _
    $region39: #{gcn_forward.3} parent=1 // pred_check_branch
      %1136 = sbr.rel (0) target = $region41
    $region40: #{gcn_forward.3} parent=1 // pred_region
      %1137 = dma.done [#allocation4], 4096
    $region41: #{gcn_forward.3} parent=1 // pred_fallthru
      _
    %1138 = vsyncpa [#allocation3], 1
    %1139 = vsyncpa [#allocation6], 1
    %1140 = vsyncpa [#allocation9], 1
    %1141 = vsyncpa [#allocation4], 1

// kernel: gcn_forward.2
$region0: #{gcn_forward.2}
  #allocation0 [shape = 'u32[]', space=smem, size = 0x4, offset = 0x4, fixed_abs, tag = 'smem constant byte address 0x4 - core index']
  #allocation1 [shape = 'u32[144,128]{1,0:T(1,128)}', space=vmem, size = 0x12000, scoped, tag = 'internal scratch']
  %s0 = inlined_call_operand.hbm [shape: s8[256,256], index: 0, kind: input, shape index: {}]
  %s1 = inlined_call_operand.hbm [shape: bf16[256,128], index: 1, kind: input, shape index: {}]
  %s2 = inlined_call_operand.hbm [shape: f32[256,1], index: 2, kind: input, shape index: {}]
  %s3 = inlined_call_operand.hbm [shape: f32[1,128], index: 3, kind: input, shape index: {}]
  %s4 = inlined_call_operand.hbm [shape: bf16[128,128], index: 4, kind: input, shape index: {}]
  %s5 = inlined_call_operand.hbm [shape: bf16[256,128], index: 5, kind: output, shape index: {}]
  %s6 = sld [smem:[#allocation0]]
  $region50: #{gcn_forward.2} parent=0
    _
  %s8 = ssub.s32 1, %s6
  %s9 = scalar_select 0, %s8, %s6
  $region1: #{gcn_forward.2} parent=0
    #allocation2 [shape = 'u8[65536]{0}', space=vmem, size = 0x10000, scoped, tag = 'input window, operand 0, single buffered']
    #allocation3 [shape = 's32[1]{0}', space=sflag, size = 0x4, scoped, tag = 'scoped memory for gcn_forward.2']
    #allocation4 [shape = 's32[1]{0}', space=sflag, size = 0x4, scoped, tag = 'scoped memory for gcn_forward.2']
    #allocation5 [shape = 'u8[65536]{0}', space=vmem, size = 0x10000, scoped, tag = 'input window, operand 1, single buffered']
    #allocation6 [shape = 's32[1]{0}', space=sflag, size = 0x4, scoped, tag = 'scoped memory for gcn_forward.2']
    #allocation7 [shape = 'u8[131072]{0}', space=vmem, size = 0x20000, scoped, tag = 'input window, operand 2, single buffered']
    #allocation8 [shape = 'u8[512]{0}', space=vmem, size = 0x400, scoped, tag = 'input window, operand 3, single buffered']
    #allocation9 [shape = 's32[1]{0}', space=sflag, size = 0x4, scoped, tag = 'scoped memory for gcn_forward.2']
    #allocation10 [shape = 'u8[32768]{0}', space=vmem, size = 0x8000, scoped, tag = 'input window, operand 4, single buffered']
    #allocation11 [shape = 'u8[65536]{0}', space=vmem, size = 0x10000, scoped, tag = 'output window, operand 0, single buffered']
    %10 = vsyncpa [#allocation3], 0
    %11 = vsyncpa [#allocation6], 0
    %12 = vsyncpa [#allocation9], 0
    %13 = vsyncpa [#allocation4], 0
    // Predicated region
    $region2: #{gcn_forward.2} parent=1 // pred_check
      _
    $region3: #{gcn_forward.2} parent=1 // pred_check_branch
      %15 = sbr.rel (0) target = $region5
    $region4: #{gcn_forward.2} parent=1 // pred_region
      %s17 = ssub.s32 2048, 2048
      %18 = vsyncadd [#allocation3], %s17
      %s19 = sshll.u32 [#allocation2], 4
      %s20 = int_to_ptr.vmem [resolvable:$true] %s19
      %25 = dma.hbm_to_vmem [thread:$0]  %s0, 2048, %s20, [#allocation3], 256, 256, 16
    $region5: #{gcn_forward.2} parent=1 // pred_fallthru
      _
    // Predicated region
    $region6: #{gcn_forward.2} parent=1 // pred_check
      _
    $region7: #{gcn_forward.2} parent=1 // pred_check_branch
      %27 = sbr.rel (0) target = $region9
    $region8: #{gcn_forward.2} parent=1 // pred_region
      %s29 = ssub.s32 2048, 2048
      %30 = vsyncadd [#allocation6], %s29
      %s31 = sshll.u32 [#allocation5], 4
      %s32 = int_to_ptr.vmem [resolvable:$true] %s31
      %37 = dma.hbm_to_vmem [thread:$0]  %s1, 2048, %s32, [#allocation6], 64, 64, 4
    $region9: #{gcn_forward.2} parent=1 // pred_fallthru
      _
    // Predicated region
    $region10: #{gcn_forward.2} parent=1 // pred_check
      _
    $region11: #{gcn_forward.2} parent=1 // pred_check_branch
      %39 = sbr.rel (0) target = $region13
    $region12: #{gcn_forward.2} parent=1 // pred_region
      %s41 = ssub.s32 4096, 4096
      %42 = vsyncadd [#allocation6], %s41
      %s43 = sshll.u32 [#allocation7], 4
      %s44 = int_to_ptr.vmem [resolvable:$true] %s43
      %49 = dma.hbm_to_vmem [thread:$0]  %s2, 4096, %s44, [#allocation6], 128, 128, 8
    $region13: #{gcn_forward.2} parent=1 // pred_fallthru
      _
    // Predicated region
    $region14: #{gcn_forward.2} parent=1 // pred_check
      _
    $region15: #{gcn_forward.2} parent=1 // pred_check_branch
      %51 = sbr.rel (0) target = $region17
    $region16: #{gcn_forward.2} parent=1 // pred_region
      %s53 = ssub.s32 16, 16
      %54 = vsyncadd [#allocation9], %s53
      %s56 = sshll.u32 [#allocation8], 4
      %s57 = int_to_ptr.vmem [resolvable:$true] %s56
      %59 = dma.hbm_to_vmem [thread:$0]  %s3, 16, %s57, [#allocation9]
    $region17: #{gcn_forward.2} parent=1 // pred_fallthru
      _
    // Predicated region
    $region18: #{gcn_forward.2} parent=1 // pred_check
      _
    $region19: #{gcn_forward.2} parent=1 // pred_check_branch
      %61 = sbr.rel (0) target = $region21
    $region20: #{gcn_forward.2} parent=1 // pred_region
      %s63 = ssub.s32 1024, 1024
      %64 = vsyncadd [#allocation9], %s63
      %s65 = sshll.u32 [#allocation10], 4
      %s66 = int_to_ptr.vmem [resolvable:$true] %s65
      %71 = dma.hbm_to_vmem [thread:$0]  %s4, 1024, %s66, [#allocation9], 64, 64, 4
    $region21: #{gcn_forward.2} parent=1 // pred_fallthru
      _
    // Predicated region
    $region22: #{gcn_forward.2} parent=1 // pred_check
      _
    $region23: #{gcn_forward.2} parent=1 // pred_check_branch
      %73 = sbr.rel (0) target = $region25
    $region24: #{gcn_forward.2} parent=1 // pred_region
      %74 = dma.done [#allocation3], 2048
    $region25: #{gcn_forward.2} parent=1 // pred_fallthru
      _
    // Predicated region
    $region26: #{gcn_forward.2} parent=1 // pred_check
      _
    $region27: #{gcn_forward.2} parent=1 // pred_check_branch
      %76 = sbr.rel (0) target = $region29
    $region28: #{gcn_forward.2} parent=1 // pred_region
      %77 = dma.done [#allocation6], 2048
    $region29: #{gcn_forward.2} parent=1 // pred_fallthru
      _
    // Predicated region
    $region30: #{gcn_forward.2} parent=1 // pred_check
      _
    $region31: #{gcn_forward.2} parent=1 // pred_check_branch
      %79 = sbr.rel (0) target = $region33
    $region32: #{gcn_forward.2} parent=1 // pred_region
      %80 = dma.done [#allocation6], 4096
    $region33: #{gcn_forward.2} parent=1 // pred_fallthru
      _
    // Predicated region
    $region34: #{gcn_forward.2} parent=1 // pred_check
      _
    $region35: #{gcn_forward.2} parent=1 // pred_check_branch
      %82 = sbr.rel (0) target = $region37
    $region36: #{gcn_forward.2} parent=1 // pred_region
      %83 = dma.done [#allocation9], 16
    $region37: #{gcn_forward.2} parent=1 // pred_fallthru
      _
    // Predicated region
    $region38: #{gcn_forward.2} parent=1 // pred_check
      _
    $region39: #{gcn_forward.2} parent=1 // pred_check_branch
      %85 = sbr.rel (0) target = $region41
    $region40: #{gcn_forward.2} parent=1 // pred_region
      %86 = dma.done [#allocation9], 1024
    $region41: #{gcn_forward.2} parent=1 // pred_fallthru
      _
    %v88 = vld [vmem:[#allocation2] sm:$0xff]
    %v89 = vld [vmem:[#allocation2 + $0x8] sm:$0xff]
    %v90 = vld [vmem:[#allocation2 + $0x10] sm:$0xff]
    %v91 = vld [vmem:[#allocation2 + $0x18] sm:$0xff]
    %v92 = vld [vmem:[#allocation2 + $0x20] sm:$0xff]
    %v93 = vld [vmem:[#allocation2 + $0x28] sm:$0xff]
    %v94 = vld [vmem:[#allocation2 + $0x30] sm:$0xff]
    %v95 = vld [vmem:[#allocation2 + $0x38] sm:$0xff]
    %v96 = vld [vmem:[#allocation2 + $0x40] sm:$0xff]
    %v97 = vld [vmem:[#allocation2 + $0x48] sm:$0xff]
    %v98 = vld [vmem:[#allocation2 + $0x50] sm:$0xff]
    %v99 = vld [vmem:[#allocation2 + $0x58] sm:$0xff]
    %v100 = vld [vmem:[#allocation2 + $0x60] sm:$0xff]
    %v101 = vld [vmem:[#allocation2 + $0x68] sm:$0xff]
    %v102 = vld [vmem:[#allocation2 + $0x70] sm:$0xff]
    %v103 = vld [vmem:[#allocation2 + $0x78] sm:$0xff]
    %v104 = vunpack.c.l.s8.bf16 %v88
    %v105 = vunpack.c.l.s8.bf16 %v89
    %v106 = vunpack.c.h.s8.bf16 %v88
    %v107 = vunpack.c.h.s8.bf16 %v89
    %v108 = vunpack.c.l.s8.bf16 %v90
    %v109 = vunpack.c.l.s8.bf16 %v91
    %v110 = vunpack.c.h.s8.bf16 %v90
    %v111 = vunpack.c.h.s8.bf16 %v91
    %v112 = vunpack.c.l.s8.bf16 %v92
    %v113 = vunpack.c.l.s8.bf16 %v93
    %v114 = vunpack.c.h.s8.bf16 %v92
    %v115 = vunpack.c.h.s8.bf16 %v93
    %v116 = vunpack.c.l.s8.bf16 %v94
    %v117 = vunpack.c.l.s8.bf16 %v95
    %v118 = vunpack.c.h.s8.bf16 %v94
    %v119 = vunpack.c.h.s8.bf16 %v95
    %v120 = vunpack.c.l.s8.bf16 %v96
    %v121 = vunpack.c.l.s8.bf16 %v97
    %v122 = vunpack.c.h.s8.bf16 %v96
    %v123 = vunpack.c.h.s8.bf16 %v97
    %v124 = vunpack.c.l.s8.bf16 %v98
    %v125 = vunpack.c.l.s8.bf16 %v99
    %v126 = vunpack.c.h.s8.bf16 %v98
    %v127 = vunpack.c.h.s8.bf16 %v99
    %v128 = vunpack.c.l.s8.bf16 %v100
    %v129 = vunpack.c.l.s8.bf16 %v101
    %v130 = vunpack.c.h.s8.bf16 %v100
    %v131 = vunpack.c.h.s8.bf16 %v101
    %v132 = vunpack.c.l.s8.bf16 %v102
    %v133 = vunpack.c.l.s8.bf16 %v103
    %v134 = vunpack.c.h.s8.bf16 %v102
    %v135 = vunpack.c.h.s8.bf16 %v103
    %v136 = vld [vmem:[#allocation5] sm:$0xf]
    %v137 = vld [vmem:[#allocation5 + $0x4] sm:$0xf]
    %v138 = vld [vmem:[#allocation5 + $0x8] sm:$0xf]
    %v139 = vld [vmem:[#allocation5 + $0xc] sm:$0xf]
    %v140 = vld [vmem:[#allocation5 + $0x10] sm:$0xf]
    %v141 = vld [vmem:[#allocation5 + $0x14] sm:$0xf]
    %v142 = vld [vmem:[#allocation5 + $0x18] sm:$0xf]
    %v143 = vld [vmem:[#allocation5 + $0x1c] sm:$0xf]
    %v144 = vld [vmem:[#allocation5 + $0x20] sm:$0xf]
    %v145 = vld [vmem:[#allocation5 + $0x24] sm:$0xf]
    %v146 = vld [vmem:[#allocation5 + $0x28] sm:$0xf]
    %v147 = vld [vmem:[#allocation5 + $0x2c] sm:$0xf]
    %v148 = vld [vmem:[#allocation5 + $0x30] sm:$0xf]
    %v149 = vld [vmem:[#allocation5 + $0x34] sm:$0xf]
    %v150 = vld [vmem:[#allocation5 + $0x38] sm:$0xf]
    %v151 = vld [vmem:[#allocation5 + $0x3c] sm:$0xf]
    %v152 = vld [vmem:[#allocation5 + $0x40] sm:$0xf]
    %v153 = vld [vmem:[#allocation5 + $0x44] sm:$0xf]
    %v154 = vld [vmem:[#allocation5 + $0x48] sm:$0xf]
    %v155 = vld [vmem:[#allocation5 + $0x4c] sm:$0xf]
    %v156 = vld [vmem:[#allocation5 + $0x50] sm:$0xf]
    %v157 = vld [vmem:[#allocation5 + $0x54] sm:$0xf]
    %v158 = vld [vmem:[#allocation5 + $0x58] sm:$0xf]
    %v159 = vld [vmem:[#allocation5 + $0x5c] sm:$0xf]
    %v160 = vld [vmem:[#allocation5 + $0x60] sm:$0xf]
    %v161 = vld [vmem:[#allocation5 + $0x64] sm:$0xf]
    %v162 = vld [vmem:[#allocation5 + $0x68] sm:$0xf]
    %v163 = vld [vmem:[#allocation5 + $0x6c] sm:$0xf]
    %v164 = vld [vmem:[#allocation5 + $0x70] sm:$0xf]
    %v165 = vld [vmem:[#allocation5 + $0x74] sm:$0xf]
    %v166 = vld [vmem:[#allocation5 + $0x78] sm:$0xf]
    %v167 = vld [vmem:[#allocation5 + $0x7c] sm:$0xf]
    %v200 = vunpack.c.l.b16 %v136
    %v201 = vunpack.c.l.b16 %v137
    %v202 = vunpack.c.l.b16 %v138
    %v203 = vunpack.c.l.b16 %v139
    %v204 = vunpack.c.l.b16 %v140
    %v205 = vunpack.c.l.b16 %v141
    %v206 = vunpack.c.l.b16 %v142
    %v207 = vunpack.c.l.b16 %v143
    %v208 = vunpack.c.l.b16 %v144
    %v209 = vunpack.c.l.b16 %v145
    %v210 = vunpack.c.l.b16 %v146
    %v211 = vunpack.c.l.b16 %v147
    %v212 = vunpack.c.l.b16 %v148
    %v213 = vunpack.c.l.b16 %v149
    %v214 = vunpack.c.l.b16 %v150
    %v215 = vunpack.c.l.b16 %v151
    %v216 = vunpack.c.l.b16 %v152
    %v217 = vunpack.c.l.b16 %v153
    %v218 = vunpack.c.l.b16 %v154
    %v219 = vunpack.c.l.b16 %v155
    %v220 = vunpack.c.l.b16 %v156
    %v221 = vunpack.c.l.b16 %v157
    %v222 = vunpack.c.l.b16 %v158
    %v223 = vunpack.c.l.b16 %v159
    %v224 = vunpack.c.l.b16 %v160
    %v225 = vunpack.c.l.b16 %v161
    %v226 = vunpack.c.l.b16 %v162
    %v227 = vunpack.c.l.b16 %v163
    %v228 = vunpack.c.l.b16 %v164
    %v229 = vunpack.c.l.b16 %v165
    %v230 = vunpack.c.l.b16 %v166
    %v231 = vunpack.c.l.b16 %v167
    %v232 = vpack.c.b16 %v201, %v200
    %v233 = vpack.c.b16 %v203, %v202
    %v234 = vpack.c.b16 %v205, %v204
    %v235 = vpack.c.b16 %v207, %v206
    %v236 = vpack.c.b16 %v209, %v208
    %v237 = vpack.c.b16 %v211, %v210
    %v238 = vpack.c.b16 %v213, %v212
    %v239 = vpack.c.b16 %v215, %v214
    %v240 = vpack.c.b16 %v217, %v216
    %v241 = vpack.c.b16 %v219, %v218
    %v242 = vpack.c.b16 %v221, %v220
    %v243 = vpack.c.b16 %v223, %v222
    %v244 = vpack.c.b16 %v225, %v224
    %v245 = vpack.c.b16 %v227, %v226
    %v246 = vpack.c.b16 %v229, %v228
    %v247 = vpack.c.b16 %v231, %v230
    %264 = vmatprep.subr.bf16.mxu0 0
    %265 = vmatpush1.bf16.msra.mxu0 %v232
    %266 = vmatprep.subr.bf16.mxu0 0
    %267 = vmatpush1.bf16.msra.mxu0 %v233
    %268 = vmatprep.subr.bf16.mxu0 0
    %269 = vmatpush1.bf16.msra.mxu0 %v234
    %270 = vmatprep.subr.bf16.mxu0 0
    %271 = vmatpush1.bf16.msra.mxu0 %v235
    %272 = vmatprep.subr.bf16.mxu0 0
    %273 = vmatpush1.bf16.msra.mxu0 %v236
    %274 = vmatprep.subr.bf16.mxu0 0
    %275 = vmatpush1.bf16.msra.mxu0 %v237
    %276 = vmatprep.subr.bf16.mxu0 0
    %277 = vmatpush1.bf16.msra.mxu0 %v238
    %278 = vmatprep.subr.bf16.mxu0 0
    %279 = vmatpush1.bf16.msra.mxu0 %v239
    %280 = vmatprep.subr.bf16.mxu0 0
    %281 = vmatpush1.bf16.msra.mxu0 %v240
    %282 = vmatprep.subr.bf16.mxu0 0
    %283 = vmatpush1.bf16.msra.mxu0 %v241
    %284 = vmatprep.subr.bf16.mxu0 0
    %285 = vmatpush1.bf16.msra.mxu0 %v242
    %286 = vmatprep.subr.bf16.mxu0 0
    %287 = vmatpush1.bf16.msra.mxu0 %v243
    %288 = vmatprep.subr.bf16.mxu0 0
    %289 = vmatpush1.bf16.msra.mxu0 %v244
    %290 = vmatprep.subr.bf16.mxu0 0
    %291 = vmatpush1.bf16.msra.mxu0 %v245
    %292 = vmatprep.subr.bf16.mxu0 0
    %293 = vmatpush1.bf16.msra.mxu0 %v246
    %294 = vmatprep.subr.bf16.mxu0 0
    %295 = vmatpush1.bf16.msra.mxu0 %v247
    %296 = vmatprep.mubr.bf16.mxu0 %v105
    %297 = vmatmul.mubr.bf16.gmra.mrb[0].mxu0 %v104
    %v298 = vpop.f32.mrb[0].mxu0
    %v299 = vadd.f32 0.0, %v298
    %v300 = vpop.f32.mrb[0].mxu0
    %v301 = vpop.f32.mrb[0].mxu0
    %v302 = vadd.f32 0.0, %v301
    %v303 = vpop.f32.mrb[0].mxu0
    %304 = vmatprep.mubr.bf16.mxu0 %v107
    %305 = vmatmul.mubr.bf16.gmra.mrb[0].mxu0 %v106
    %v306 = vpop.f32.mrb[0].mxu0
    %v307 = vadd.f32 0.0, %v306
    %v308 = vpop.f32.mrb[0].mxu0
    %v309 = vpop.f32.mrb[0].mxu0
    %v310 = vadd.f32 0.0, %v309
    %v311 = vpop.f32.mrb[0].mxu0
    %312 = vmatprep.mubr.bf16.mxu0 %v109
    %313 = vmatmul.mubr.bf16.gmra.mrb[0].mxu0 %v108
    %v314 = vpop.f32.mrb[0].mxu0
    %v315 = vadd.f32 0.0, %v314
    %v316 = vpop.f32.mrb[0].mxu0
    %v317 = vpop.f32.mrb[0].mxu0
    %v318 = vadd.f32 0.0, %v317
    %v319 = vpop.f32.mrb[0].mxu0
    %320 = vmatprep.mubr.bf16.mxu0 %v111
    %321 = vmatmul.mubr.bf16.gmra.mrb[0].mxu0 %v110
    %v322 = vpop.f32.mrb[0].mxu0
    %v323 = vadd.f32 0.0, %v322
    %v324 = vpop.f32.mrb[0].mxu0
    %v325 = vpop.f32.mrb[0].mxu0
    %v326 = vadd.f32 0.0, %v325
    %v327 = vpop.f32.mrb[0].mxu0
    %328 = vmatprep.mubr.bf16.mxu0 %v113
    %329 = vmatmul.mubr.bf16.gmra.mrb[0].mxu0 %v112
    %v330 = vpop.f32.mrb[0].mxu0
    %v331 = vadd.f32 0.0, %v330
    %v332 = vpop.f32.mrb[0].mxu0
    %v333 = vpop.f32.mrb[0].mxu0
    %v334 = vadd.f32 0.0, %v333
    %v335 = vpop.f32.mrb[0].mxu0
    %336 = vmatprep.mubr.bf16.mxu0 %v115
    %337 = vmatmul.mubr.bf16.gmra.mrb[0].mxu0 %v114
    %v338 = vpop.f32.mrb[0].mxu0
    %v339 = vadd.f32 0.0, %v338
    %v340 = vpop.f32.mrb[0].mxu0
    %v341 = vpop.f32.mrb[0].mxu0
    %v342 = vadd.f32 0.0, %v341
    %v343 = vpop.f32.mrb[0].mxu0
    %344 = vmatprep.mubr.bf16.mxu0 %v117
    %345 = vmatmul.mubr.bf16.gmra.mrb[0].mxu0 %v116
    %v346 = vpop.f32.mrb[0].mxu0
    %v347 = vadd.f32 0.0, %v346
    %v348 = vpop.f32.mrb[0].mxu0
    %v349 = vpop.f32.mrb[0].mxu0
    %v350 = vadd.f32 0.0, %v349
    %v351 = vpop.f32.mrb[0].mxu0
    %352 = vmatprep.mubr.bf16.mxu0 %v119
    %353 = vmatmul.mubr.bf16.gmra.mrb[0].mxu0 %v118
    %v354 = vpop.f32.mrb[0].mxu0
    %v355 = vadd.f32 0.0, %v354
    %v356 = vpop.f32.mrb[0].mxu0
    %v357 = vpop.f32.mrb[0].mxu0
    %v358 = vadd.f32 0.0, %v357
    %v359 = vpop.f32.mrb[0].mxu0
    %360 = vmatprep.mubr.bf16.mxu0 %v121
    %361 = vmatmul.mubr.bf16.gmra.mrb[0].mxu0 %v120
    %v362 = vpop.f32.mrb[0].mxu0
    %v363 = vadd.f32 0.0, %v362
    %v364 = vpop.f32.mrb[0].mxu0
    %v365 = vpop.f32.mrb[0].mxu0
    %v366 = vadd.f32 0.0, %v365
    %v367 = vpop.f32.mrb[0].mxu0
    %368 = vmatprep.mubr.bf16.mxu0 %v123
    %369 = vmatmul.mubr.bf16.gmra.mrb[0].mxu0 %v122
    %v370 = vpop.f32.mrb[0].mxu0
    %v371 = vadd.f32 0.0, %v370
    %v372 = vpop.f32.mrb[0].mxu0
    %v373 = vpop.f32.mrb[0].mxu0
    %v374 = vadd.f32 0.0, %v373
    %v375 = vpop.f32.mrb[0].mxu0
    %376 = vmatprep.mubr.bf16.mxu0 %v125
    %377 = vmatmul.mubr.bf16.gmra.mrb[0].mxu0 %v124
    %v378 = vpop.f32.mrb[0].mxu0
    %v379 = vadd.f32 0.0, %v378
    %v380 = vpop.f32.mrb[0].mxu0
    %v381 = vpop.f32.mrb[0].mxu0
    %v382 = vadd.f32 0.0, %v381
    %v383 = vpop.f32.mrb[0].mxu0
    %384 = vmatprep.mubr.bf16.mxu0 %v127
    %385 = vmatmul.mubr.bf16.gmra.mrb[0].mxu0 %v126
    %v386 = vpop.f32.mrb[0].mxu0
    %v387 = vadd.f32 0.0, %v386
    %v388 = vpop.f32.mrb[0].mxu0
    %v389 = vpop.f32.mrb[0].mxu0
    %v390 = vadd.f32 0.0, %v389
    %v391 = vpop.f32.mrb[0].mxu0
    %392 = vmatprep.mubr.bf16.mxu0 %v129
    %393 = vmatmul.mubr.bf16.gmra.mrb[0].mxu0 %v128
    %v394 = vpop.f32.mrb[0].mxu0
    %v395 = vadd.f32 0.0, %v394
    %v396 = vpop.f32.mrb[0].mxu0
    %v397 = vpop.f32.mrb[0].mxu0
    %v398 = vadd.f32 0.0, %v397
    %v399 = vpop.f32.mrb[0].mxu0
    %400 = vmatprep.mubr.bf16.mxu0 %v131
    %401 = vmatmul.mubr.bf16.gmra.mrb[0].mxu0 %v130
    %v402 = vpop.f32.mrb[0].mxu0
    %v403 = vadd.f32 0.0, %v402
    %v404 = vpop.f32.mrb[0].mxu0
    %v405 = vpop.f32.mrb[0].mxu0
    %v406 = vadd.f32 0.0, %v405
    %v407 = vpop.f32.mrb[0].mxu0
    %408 = vmatprep.mubr.bf16.mxu0 %v133
    %409 = vmatmul.mubr.bf16.gmra.mrb[0].mxu0 %v132
    %v410 = vpop.f32.mrb[0].mxu0
    %v411 = vadd.f32 0.0, %v410
    %v412 = vpop.f32.mrb[0].mxu0
    %v413 = vpop.f32.mrb[0].mxu0
    %v414 = vadd.f32 0.0, %v413
    %v415 = vpop.f32.mrb[0].mxu0
    %416 = vmatprep.mubr.bf16.mxu0 %v135
    %417 = vmatmul.mubr.bf16.gmra.mrb[0].mxu0 %v134
    %v418 = vpop.f32.mrb[0].mxu0
    %v419 = vadd.f32 0.0, %v418
    %v420 = vpop.f32.mrb[0].mxu0
    %v421 = vpop.f32.mrb[0].mxu0
    %v422 = vadd.f32 0.0, %v421
    %v423 = vpop.f32.mrb[0].mxu0
    %424 = vdwg.mxu0
    %v425 = vld [vmem:[#allocation7] sm:$0xff]
    %v426 = vld [vmem:[#allocation7 + $0x8] sm:$0xff]
    %v427 = vld [vmem:[#allocation7 + $0x10] sm:$0xff]
    %v428 = vld [vmem:[#allocation7 + $0x18] sm:$0xff]
    %v429 = vld [vmem:[#allocation7 + $0x20] sm:$0xff]
    %v430 = vld [vmem:[#allocation7 + $0x28] sm:$0xff]
    %v431 = vld [vmem:[#allocation7 + $0x30] sm:$0xff]
    %v432 = vld [vmem:[#allocation7 + $0x38] sm:$0xff]
    %v433 = vld [vmem:[#allocation7 + $0x40] sm:$0xff]
    %v434 = vld [vmem:[#allocation7 + $0x48] sm:$0xff]
    %v435 = vld [vmem:[#allocation7 + $0x50] sm:$0xff]
    %v436 = vld [vmem:[#allocation7 + $0x58] sm:$0xff]
    %v437 = vld [vmem:[#allocation7 + $0x60] sm:$0xff]
    %v438 = vld [vmem:[#allocation7 + $0x68] sm:$0xff]
    %v439 = vld [vmem:[#allocation7 + $0x70] sm:$0xff]
    %v440 = vld [vmem:[#allocation7 + $0x78] sm:$0xff]
    %v441 = vld [vmem:[#allocation7 + $0x80] sm:$0xff]
    %v442 = vld [vmem:[#allocation7 + $0x88] sm:$0xff]
    %v443 = vld [vmem:[#allocation7 + $0x90] sm:$0xff]
    %v444 = vld [vmem:[#allocation7 + $0x98] sm:$0xff]
    %v445 = vld [vmem:[#allocation7 + $0xa0] sm:$0xff]
    %v446 = vld [vmem:[#allocation7 + $0xa8] sm:$0xff]
    %v447 = vld [vmem:[#allocation7 + $0xb0] sm:$0xff]
    %v448 = vld [vmem:[#allocation7 + $0xb8] sm:$0xff]
    %v449 = vld [vmem:[#allocation7 + $0xc0] sm:$0xff]
    %v450 = vld [vmem:[#allocation7 + $0xc8] sm:$0xff]
    %v451 = vld [vmem:[#allocation7 + $0xd0] sm:$0xff]
    %v452 = vld [vmem:[#allocation7 + $0xd8] sm:$0xff]
    %v453 = vld [vmem:[#allocation7 + $0xe0] sm:$0xff]
    %v454 = vld [vmem:[#allocation7 + $0xe8] sm:$0xff]
    %v455 = vld [vmem:[#allocation7 + $0xf0] sm:$0xff]
    %v456 = vld [vmem:[#allocation7 + $0xf8] sm:$0xff]
    %458 = vset.pattern.permute.xlu0 0
    %459 = vperm.xlu0 %458, %v425
    %v460 = vpop.permute.xlu0 %459
    %463 = vset.pattern.permute.xlu0 0
    %464 = vperm.xlu0 %463, %v426
    %v465 = vpop.permute.xlu0 %464
    %468 = vset.pattern.permute.xlu0 0
    %469 = vperm.xlu0 %468, %v427
    %v470 = vpop.permute.xlu0 %469
    %473 = vset.pattern.permute.xlu0 0
    %474 = vperm.xlu0 %473, %v428
    %v475 = vpop.permute.xlu0 %474
    %478 = vset.pattern.permute.xlu0 0
    %479 = vperm.xlu0 %478, %v429
    %v480 = vpop.permute.xlu0 %479
    %483 = vset.pattern.permute.xlu0 0
    %484 = vperm.xlu0 %483, %v430
    %v485 = vpop.permute.xlu0 %484
    %488 = vset.pattern.permute.xlu0 0
    %489 = vperm.xlu0 %488, %v431
    %v490 = vpop.permute.xlu0 %489
    %493 = vset.pattern.permute.xlu0 0
    %494 = vperm.xlu0 %493, %v432
    %v495 = vpop.permute.xlu0 %494
    %498 = vset.pattern.permute.xlu0 0
    %499 = vperm.xlu0 %498, %v433
    %v500 = vpop.permute.xlu0 %499
    %503 = vset.pattern.permute.xlu0 0
    %504 = vperm.xlu0 %503, %v434
    %v505 = vpop.permute.xlu0 %504
    %508 = vset.pattern.permute.xlu0 0
    %509 = vperm.xlu0 %508, %v435
    %v510 = vpop.permute.xlu0 %509
    %513 = vset.pattern.permute.xlu0 0
    %514 = vperm.xlu0 %513, %v436
    %v515 = vpop.permute.xlu0 %514
    %518 = vset.pattern.permute.xlu0 0
    %519 = vperm.xlu0 %518, %v437
    %v520 = vpop.permute.xlu0 %519
    %523 = vset.pattern.permute.xlu0 0
    %524 = vperm.xlu0 %523, %v438
    %v525 = vpop.permute.xlu0 %524
    %528 = vset.pattern.permute.xlu0 0
    %529 = vperm.xlu0 %528, %v439
    %v530 = vpop.permute.xlu0 %529
    %533 = vset.pattern.permute.xlu0 0
    %534 = vperm.xlu0 %533, %v440
    %v535 = vpop.permute.xlu0 %534
    %538 = vset.pattern.permute.xlu0 0
    %539 = vperm.xlu0 %538, %v441
    %v540 = vpop.permute.xlu0 %539
    %543 = vset.pattern.permute.xlu0 0
    %544 = vperm.xlu0 %543, %v442
    %v545 = vpop.permute.xlu0 %544
    %548 = vset.pattern.permute.xlu0 0
    %549 = vperm.xlu0 %548, %v443
    %v550 = vpop.permute.xlu0 %549
    %553 = vset.pattern.permute.xlu0 0
    %554 = vperm.xlu0 %553, %v444
    %v555 = vpop.permute.xlu0 %554
    %558 = vset.pattern.permute.xlu0 0
    %559 = vperm.xlu0 %558, %v445
    %v560 = vpop.permute.xlu0 %559
    %563 = vset.pattern.permute.xlu0 0
    %564 = vperm.xlu0 %563, %v446
    %v565 = vpop.permute.xlu0 %564
    %568 = vset.pattern.permute.xlu0 0
    %569 = vperm.xlu0 %568, %v447
    %v570 = vpop.permute.xlu0 %569
    %573 = vset.pattern.permute.xlu0 0
    %574 = vperm.xlu0 %573, %v448
    %v575 = vpop.permute.xlu0 %574
    %578 = vset.pattern.permute.xlu0 0
    %579 = vperm.xlu0 %578, %v449
    %v580 = vpop.permute.xlu0 %579
    %583 = vset.pattern.permute.xlu0 0
    %584 = vperm.xlu0 %583, %v450
    %v585 = vpop.permute.xlu0 %584
    %588 = vset.pattern.permute.xlu0 0
    %589 = vperm.xlu0 %588, %v451
    %v590 = vpop.permute.xlu0 %589
    %593 = vset.pattern.permute.xlu0 0
    %594 = vperm.xlu0 %593, %v452
    %v595 = vpop.permute.xlu0 %594
    %598 = vset.pattern.permute.xlu0 0
    %599 = vperm.xlu0 %598, %v453
    %v600 = vpop.permute.xlu0 %599
    %603 = vset.pattern.permute.xlu0 0
    %604 = vperm.xlu0 %603, %v454
    %v605 = vpop.permute.xlu0 %604
    %608 = vset.pattern.permute.xlu0 0
    %609 = vperm.xlu0 %608, %v455
    %v610 = vpop.permute.xlu0 %609
    %613 = vset.pattern.permute.xlu0 0
    %614 = vperm.xlu0 %613, %v456
    %v615 = vpop.permute.xlu0 %614
    %v617 = vmul.f32 %v299, %v460
    %v618 = vmul.f32 %v302, %v465
    %v619 = vmul.f32 %v307, %v470
    %v620 = vmul.f32 %v310, %v475
    %v621 = vmul.f32 %v315, %v480
    %v622 = vmul.f32 %v318, %v485
    %v623 = vmul.f32 %v323, %v490
    %v624 = vmul.f32 %v326, %v495
    %v625 = vmul.f32 %v331, %v500
    %v626 = vmul.f32 %v334, %v505
    %v627 = vmul.f32 %v339, %v510
    %v628 = vmul.f32 %v342, %v515
    %v629 = vmul.f32 %v347, %v520
    %v630 = vmul.f32 %v350, %v525
    %v631 = vmul.f32 %v355, %v530
    %v632 = vmul.f32 %v358, %v535
    %v633 = vmul.f32 %v363, %v540
    %v634 = vmul.f32 %v366, %v545
    %v635 = vmul.f32 %v371, %v550
    %v636 = vmul.f32 %v374, %v555
    %v637 = vmul.f32 %v379, %v560
    %v638 = vmul.f32 %v382, %v565
    %v639 = vmul.f32 %v387, %v570
    %v640 = vmul.f32 %v390, %v575
    %v641 = vmul.f32 %v395, %v580
    %v642 = vmul.f32 %v398, %v585
    %v643 = vmul.f32 %v403, %v590
    %v644 = vmul.f32 %v406, %v595
    %v645 = vmul.f32 %v411, %v600
    %v646 = vmul.f32 %v414, %v605
    %v647 = vmul.f32 %v419, %v610
    %v648 = vmul.f32 %v422, %v615
    %v649 = vld [vmem:[#allocation8] sm:$0x1]
    %v651 = vlaneseq
    %v652 = vshrl.u32 %v651, 7
    %v653 = vsub.s32 0, %v652
    %v654 = vrot.slane %v649, %v653
    %v656 = vadd.f32 %v617, %v654
    %v657 = vadd.f32 %v618, %v654
    %v658 = vadd.f32 %v619, %v654
    %v659 = vadd.f32 %v620, %v654
    %v660 = vadd.f32 %v621, %v654
    %v661 = vadd.f32 %v622, %v654
    %v662 = vadd.f32 %v623, %v654
    %v663 = vadd.f32 %v624, %v654
    %v664 = vadd.f32 %v625, %v654
    %v665 = vadd.f32 %v626, %v654
    %v666 = vadd.f32 %v627, %v654
    %v667 = vadd.f32 %v628, %v654
    %v668 = vadd.f32 %v629, %v654
    %v669 = vadd.f32 %v630, %v654
    %v670 = vadd.f32 %v631, %v654
    %v671 = vadd.f32 %v632, %v654
    %v672 = vadd.f32 %v633, %v654
    %v673 = vadd.f32 %v634, %v654
    %v674 = vadd.f32 %v635, %v654
    %v675 = vadd.f32 %v636, %v654
    %v676 = vadd.f32 %v637, %v654
    %v677 = vadd.f32 %v638, %v654
    %v678 = vadd.f32 %v639, %v654
    %v679 = vadd.f32 %v640, %v654
    %v680 = vadd.f32 %v641, %v654
    %v681 = vadd.f32 %v642, %v654
    %v682 = vadd.f32 %v643, %v654
    %v683 = vadd.f32 %v644, %v654
    %v684 = vadd.f32 %v645, %v654
    %v685 = vadd.f32 %v646, %v654
    %v686 = vadd.f32 %v647, %v654
    %v687 = vadd.f32 %v648, %v654
    %v688 = vmax.f32 %v656, 0.0
    %v689 = vmax.f32 %v657, 0.0
    %v690 = vmax.f32 %v658, 0.0
    %v691 = vmax.f32 %v659, 0.0
    %v692 = vmax.f32 %v660, 0.0
    %v693 = vmax.f32 %v661, 0.0
    %v694 = vmax.f32 %v662, 0.0
    %v695 = vmax.f32 %v663, 0.0
    %v696 = vmax.f32 %v664, 0.0
    %v697 = vmax.f32 %v665, 0.0
    %v698 = vmax.f32 %v666, 0.0
    %v699 = vmax.f32 %v667, 0.0
    %v700 = vmax.f32 %v668, 0.0
    %v701 = vmax.f32 %v669, 0.0
    %v702 = vmax.f32 %v670, 0.0
    %v703 = vmax.f32 %v671, 0.0
    %v704 = vmax.f32 %v672, 0.0
    %v705 = vmax.f32 %v673, 0.0
    %v706 = vmax.f32 %v674, 0.0
    %v707 = vmax.f32 %v675, 0.0
    %v708 = vmax.f32 %v676, 0.0
    %v709 = vmax.f32 %v677, 0.0
    %v710 = vmax.f32 %v678, 0.0
    %v711 = vmax.f32 %v679, 0.0
    %v712 = vmax.f32 %v680, 0.0
    %v713 = vmax.f32 %v681, 0.0
    %v714 = vmax.f32 %v682, 0.0
    %v715 = vmax.f32 %v683, 0.0
    %v716 = vmax.f32 %v684, 0.0
    %v717 = vmax.f32 %v685, 0.0
    %v718 = vmax.f32 %v686, 0.0
    %v719 = vmax.f32 %v687, 0.0
    %v720 = vpack.c.bf16 %v689, %v688
    %v721 = vpack.c.bf16 %v691, %v690
    %v722 = vpack.c.bf16 %v693, %v692
    %v723 = vpack.c.bf16 %v695, %v694
    %v724 = vpack.c.bf16 %v697, %v696
    %v725 = vpack.c.bf16 %v699, %v698
    %v726 = vpack.c.bf16 %v701, %v700
    %v727 = vpack.c.bf16 %v703, %v702
    %v728 = vpack.c.bf16 %v705, %v704
    %v729 = vpack.c.bf16 %v707, %v706
    %v730 = vpack.c.bf16 %v709, %v708
    %v731 = vpack.c.bf16 %v711, %v710
    %v732 = vpack.c.bf16 %v713, %v712
    %v733 = vpack.c.bf16 %v715, %v714
    %v734 = vpack.c.bf16 %v717, %v716
    %v735 = vpack.c.bf16 %v719, %v718
    %v736 = vld [vmem:[#allocation10] sm:$0xf]
    %v737 = vld [vmem:[#allocation10 + $0x4] sm:$0xf]
    %v738 = vld [vmem:[#allocation10 + $0x8] sm:$0xf]
    %v739 = vld [vmem:[#allocation10 + $0xc] sm:$0xf]
    %v740 = vld [vmem:[#allocation10 + $0x10] sm:$0xf]
    %v741 = vld [vmem:[#allocation10 + $0x14] sm:$0xf]
    %v742 = vld [vmem:[#allocation10 + $0x18] sm:$0xf]
    %v743 = vld [vmem:[#allocation10 + $0x1c] sm:$0xf]
    %v744 = vld [vmem:[#allocation10 + $0x20] sm:$0xf]
    %v745 = vld [vmem:[#allocation10 + $0x24] sm:$0xf]
    %v746 = vld [vmem:[#allocation10 + $0x28] sm:$0xf]
    %v747 = vld [vmem:[#allocation10 + $0x2c] sm:$0xf]
    %v748 = vld [vmem:[#allocation10 + $0x30] sm:$0xf]
    %v749 = vld [vmem:[#allocation10 + $0x34] sm:$0xf]
    %v750 = vld [vmem:[#allocation10 + $0x38] sm:$0xf]
    %v751 = vld [vmem:[#allocation10 + $0x3c] sm:$0xf]
    %v768 = vunpack.c.l.b16 %v736
    %v769 = vunpack.c.l.b16 %v737
    %v770 = vunpack.c.l.b16 %v738
    %v771 = vunpack.c.l.b16 %v739
    %v772 = vunpack.c.l.b16 %v740
    %v773 = vunpack.c.l.b16 %v741
    %v774 = vunpack.c.l.b16 %v742
    %v775 = vunpack.c.l.b16 %v743
    %v776 = vunpack.c.l.b16 %v744
    %v777 = vunpack.c.l.b16 %v745
    %v778 = vunpack.c.l.b16 %v746
    %v779 = vunpack.c.l.b16 %v747
    %v780 = vunpack.c.l.b16 %v748
    %v781 = vunpack.c.l.b16 %v749
    %v782 = vunpack.c.l.b16 %v750
    %v783 = vunpack.c.l.b16 %v751
    %v784 = vpack.c.b16 %v769, %v768
    %v785 = vpack.c.b16 %v771, %v770
    %v786 = vpack.c.b16 %v773, %v772
    %v787 = vpack.c.b16 %v775, %v774
    %v788 = vpack.c.b16 %v777, %v776
    %v789 = vpack.c.b16 %v779, %v778
    %v790 = vpack.c.b16 %v781, %v780
    %v791 = vpack.c.b16 %v783, %v782
    %800 = vmatprep.subr.bf16.mxu0 0
    %801 = vmatpush1.bf16.msra.mxu0 %v784
    %802 = vmatprep.subr.bf16.mxu0 0
    %803 = vmatpush1.bf16.msra.mxu0 %v785
    %804 = vmatprep.subr.bf16.mxu0 0
    %805 = vmatpush1.bf16.msra.mxu0 %v786
    %806 = vmatprep.subr.bf16.mxu0 0
    %807 = vmatpush1.bf16.msra.mxu0 %v787
    %808 = vmatprep.subr.bf16.mxu0 0
    %809 = vmatpush1.bf16.msra.mxu0 %v788
    %810 = vmatprep.subr.bf16.mxu0 0
    %811 = vmatpush1.bf16.msra.mxu0 %v789
    %812 = vmatprep.subr.bf16.mxu0 0
    %813 = vmatpush1.bf16.msra.mxu0 %v790
    %814 = vmatprep.subr.bf16.mxu0 0
    %815 = vmatpush1.bf16.msra.mxu0 %v791
    %816 = vmatprep.subr.bf16.mxu0 0
    %817 = vmatpush1.bf16.msra.mxu0 0
    %818 = vmatprep.subr.bf16.mxu0 0
    %819 = vmatpush1.bf16.msra.mxu0 0
    %820 = vmatprep.subr.bf16.mxu0 0
    %821 = vmatpush1.bf16.msra.mxu0 0
    %822 = vmatprep.subr.bf16.mxu0 0
    %823 = vmatpush1.bf16.msra.mxu0 0
    %824 = vmatprep.subr.bf16.mxu0 0
    %825 = vmatpush1.bf16.msra.mxu0 0
    %826 = vmatprep.subr.bf16.mxu0 0
    %827 = vmatpush1.bf16.msra.mxu0 0
    %828 = vmatprep.subr.bf16.mxu0 0
    %829 = vmatpush1.bf16.msra.mxu0 0
    %830 = vmatprep.subr.bf16.mxu0 0
    %831 = vmatpush1.bf16.msra.mxu0 0
    %832 = vmatprep.mubr.bf16.mxu0 0
    %833 = vmatmul.mubr.bf16.gmra.mrb[0].mxu0 %v720
    %v834 = vpop.f32.mrb[0].mxu0
    %v835 = vadd.f32 0.0, %v834
    %v836 = vpop.f32.mrb[0].mxu0
    %v837 = vpop.f32.mrb[0].mxu0
    %v838 = vadd.f32 0.0, %v837
    %v839 = vpop.f32.mrb[0].mxu0
    %840 = vmatprep.mubr.bf16.mxu0 0
    %841 = vmatmul.mubr.bf16.gmra.mrb[0].mxu0 %v721
    %v842 = vpop.f32.mrb[0].mxu0
    %v843 = vadd.f32 0.0, %v842
    %v844 = vpop.f32.mrb[0].mxu0
    %v845 = vpop.f32.mrb[0].mxu0
    %v846 = vadd.f32 0.0, %v845
    %v847 = vpop.f32.mrb[0].mxu0
    %848 = vmatprep.mubr.bf16.mxu0 0
    %849 = vmatmul.mubr.bf16.gmra.mrb[0].mxu0 %v722
    %v850 = vpop.f32.mrb[0].mxu0
    %v851 = vadd.f32 0.0, %v850
    %v852 = vpop.f32.mrb[0].mxu0
    %v853 = vpop.f32.mrb[0].mxu0
    %v854 = vadd.f32 0.0, %v853
    %v855 = vpop.f32.mrb[0].mxu0
    %856 = vmatprep.mubr.bf16.mxu0 0
    %857 = vmatmul.mubr.bf16.gmra.mrb[0].mxu0 %v723
    %v858 = vpop.f32.mrb[0].mxu0
    %v859 = vadd.f32 0.0, %v858
    %v860 = vpop.f32.mrb[0].mxu0
    %v861 = vpop.f32.mrb[0].mxu0
    %v862 = vadd.f32 0.0, %v861
    %v863 = vpop.f32.mrb[0].mxu0
    %864 = vmatprep.mubr.bf16.mxu0 0
    %865 = vmatmul.mubr.bf16.gmra.mrb[0].mxu0 %v724
    %v866 = vpop.f32.mrb[0].mxu0
    %v867 = vadd.f32 0.0, %v866
    %v868 = vpop.f32.mrb[0].mxu0
    %v869 = vpop.f32.mrb[0].mxu0
    %v870 = vadd.f32 0.0, %v869
    %v871 = vpop.f32.mrb[0].mxu0
    %872 = vmatprep.mubr.bf16.mxu0 0
    %873 = vmatmul.mubr.bf16.gmra.mrb[0].mxu0 %v725
    %v874 = vpop.f32.mrb[0].mxu0
    %v875 = vadd.f32 0.0, %v874
    %v876 = vpop.f32.mrb[0].mxu0
    %v877 = vpop.f32.mrb[0].mxu0
    %v878 = vadd.f32 0.0, %v877
    %v879 = vpop.f32.mrb[0].mxu0
    %880 = vmatprep.mubr.bf16.mxu0 0
    %881 = vmatmul.mubr.bf16.gmra.mrb[0].mxu0 %v726
    %v882 = vpop.f32.mrb[0].mxu0
    %v883 = vadd.f32 0.0, %v882
    %v884 = vpop.f32.mrb[0].mxu0
    %v885 = vpop.f32.mrb[0].mxu0
    %v886 = vadd.f32 0.0, %v885
    %v887 = vpop.f32.mrb[0].mxu0
    %888 = vmatprep.mubr.bf16.mxu0 0
    %889 = vmatmul.mubr.bf16.gmra.mrb[0].mxu0 %v727
    %v890 = vpop.f32.mrb[0].mxu0
    %v891 = vadd.f32 0.0, %v890
    %v892 = vpop.f32.mrb[0].mxu0
    %v893 = vpop.f32.mrb[0].mxu0
    %v894 = vadd.f32 0.0, %v893
    %v895 = vpop.f32.mrb[0].mxu0
    %896 = vmatprep.mubr.bf16.mxu0 0
    %897 = vmatmul.mubr.bf16.gmra.mrb[0].mxu0 %v728
    %v898 = vpop.f32.mrb[0].mxu0
    %v899 = vadd.f32 0.0, %v898
    %v900 = vpop.f32.mrb[0].mxu0
    %v901 = vpop.f32.mrb[0].mxu0
    %v902 = vadd.f32 0.0, %v901
    %v903 = vpop.f32.mrb[0].mxu0
    %904 = vmatprep.mubr.bf16.mxu0 0
    %905 = vmatmul.mubr.bf16.gmra.mrb[0].mxu0 %v729
    %v906 = vpop.f32.mrb[0].mxu0
    %v907 = vadd.f32 0.0, %v906
    %v908 = vpop.f32.mrb[0].mxu0
    %v909 = vpop.f32.mrb[0].mxu0
    %v910 = vadd.f32 0.0, %v909
    %v911 = vpop.f32.mrb[0].mxu0
    %912 = vmatprep.mubr.bf16.mxu0 0
    %913 = vmatmul.mubr.bf16.gmra.mrb[0].mxu0 %v730
    %v914 = vpop.f32.mrb[0].mxu0
    %v915 = vadd.f32 0.0, %v914
    %v916 = vpop.f32.mrb[0].mxu0
    %v917 = vpop.f32.mrb[0].mxu0
    %v918 = vadd.f32 0.0, %v917
    %v919 = vpop.f32.mrb[0].mxu0
    %920 = vmatprep.mubr.bf16.mxu0 0
    %921 = vmatmul.mubr.bf16.gmra.mrb[0].mxu0 %v731
    %v922 = vpop.f32.mrb[0].mxu0
    %v923 = vadd.f32 0.0, %v922
    %v924 = vpop.f32.mrb[0].mxu0
    %v925 = vpop.f32.mrb[0].mxu0
    %v926 = vadd.f32 0.0, %v925
    %v927 = vpop.f32.mrb[0].mxu0
    %928 = vmatprep.mubr.bf16.mxu0 0
    %929 = vmatmul.mubr.bf16.gmra.mrb[0].mxu0 %v732
    %v930 = vpop.f32.mrb[0].mxu0
    %v931 = vadd.f32 0.0, %v930
    %v932 = vpop.f32.mrb[0].mxu0
    %v933 = vpop.f32.mrb[0].mxu0
    %v934 = vadd.f32 0.0, %v933
    %v935 = vpop.f32.mrb[0].mxu0
    %936 = vmatprep.mubr.bf16.mxu0 0
    %937 = vmatmul.mubr.bf16.gmra.mrb[0].mxu0 %v733
    %v938 = vpop.f32.mrb[0].mxu0
    %v939 = vadd.f32 0.0, %v938
    %v940 = vpop.f32.mrb[0].mxu0
    %v941 = vpop.f32.mrb[0].mxu0
    %v942 = vadd.f32 0.0, %v941
    %v943 = vpop.f32.mrb[0].mxu0
    %944 = vmatprep.mubr.bf16.mxu0 0
    %945 = vmatmul.mubr.bf16.gmra.mrb[0].mxu0 %v734
    %v946 = vpop.f32.mrb[0].mxu0
    %v947 = vadd.f32 0.0, %v946
    %v948 = vpop.f32.mrb[0].mxu0
    %v949 = vpop.f32.mrb[0].mxu0
    %v950 = vadd.f32 0.0, %v949
    %v951 = vpop.f32.mrb[0].mxu0
    %952 = vmatprep.mubr.bf16.mxu0 0
    %953 = vmatmul.mubr.bf16.gmra.mrb[0].mxu0 %v735
    %v954 = vpop.f32.mrb[0].mxu0
    %v955 = vadd.f32 0.0, %v954
    %v956 = vpop.f32.mrb[0].mxu0
    %v957 = vpop.f32.mrb[0].mxu0
    %v958 = vadd.f32 0.0, %v957
    %v959 = vpop.f32.mrb[0].mxu0
    %960 = vdwg.mxu0
    %v961 = vmul.f32 %v835, %v460
    %v962 = vmul.f32 %v838, %v465
    %v963 = vmul.f32 %v843, %v470
    %v964 = vmul.f32 %v846, %v475
    %v965 = vmul.f32 %v851, %v480
    %v966 = vmul.f32 %v854, %v485
    %v967 = vmul.f32 %v859, %v490
    %v968 = vmul.f32 %v862, %v495
    %v969 = vmul.f32 %v867, %v500
    %v970 = vmul.f32 %v870, %v505
    %v971 = vmul.f32 %v875, %v510
    %v972 = vmul.f32 %v878, %v515
    %v973 = vmul.f32 %v883, %v520
    %v974 = vmul.f32 %v886, %v525
    %v975 = vmul.f32 %v891, %v530
    %v976 = vmul.f32 %v894, %v535
    %v977 = vmul.f32 %v899, %v540
    %v978 = vmul.f32 %v902, %v545
    %v979 = vmul.f32 %v907, %v550
    %v980 = vmul.f32 %v910, %v555
    %v981 = vmul.f32 %v915, %v560
    %v982 = vmul.f32 %v918, %v565
    %v983 = vmul.f32 %v923, %v570
    %v984 = vmul.f32 %v926, %v575
    %v985 = vmul.f32 %v931, %v580
    %v986 = vmul.f32 %v934, %v585
    %v987 = vmul.f32 %v939, %v590
    %v988 = vmul.f32 %v942, %v595
    %v989 = vmul.f32 %v947, %v600
    %v990 = vmul.f32 %v950, %v605
    %v991 = vmul.f32 %v955, %v610
    %v992 = vmul.f32 %v958, %v615
    %v993 = vpack.c.bf16 %v962, %v961
    %v994 = vpack.c.bf16 %v964, %v963
    %v995 = vpack.c.bf16 %v966, %v965
    %v996 = vpack.c.bf16 %v968, %v967
    %v997 = vpack.c.bf16 %v970, %v969
    %v998 = vpack.c.bf16 %v972, %v971
    %v999 = vpack.c.bf16 %v974, %v973
    %v1000 = vpack.c.bf16 %v976, %v975
    %v1001 = vpack.c.bf16 %v978, %v977
    %v1002 = vpack.c.bf16 %v980, %v979
    %v1003 = vpack.c.bf16 %v982, %v981
    %v1004 = vpack.c.bf16 %v984, %v983
    %v1005 = vpack.c.bf16 %v986, %v985
    %v1006 = vpack.c.bf16 %v988, %v987
    %v1007 = vpack.c.bf16 %v990, %v989
    %v1008 = vpack.c.bf16 %v992, %v991
    %v1025 = vunpack.c.l.b16 %v993
    %v1026 = vunpack.c.h.b16 %v993
    %v1027 = vunpack.c.l.b16 %v994
    %v1028 = vunpack.c.h.b16 %v994
    %v1029 = vunpack.c.l.b16 %v995
    %v1030 = vunpack.c.h.b16 %v995
    %v1031 = vunpack.c.l.b16 %v996
    %v1032 = vunpack.c.h.b16 %v996
    %v1033 = vunpack.c.l.b16 %v997
    %v1034 = vunpack.c.h.b16 %v997
    %v1035 = vunpack.c.l.b16 %v998
    %v1036 = vunpack.c.h.b16 %v998
    %v1037 = vunpack.c.l.b16 %v999
    %v1038 = vunpack.c.h.b16 %v999
    %v1039 = vunpack.c.l.b16 %v1000
    %v1040 = vunpack.c.h.b16 %v1000
    %v1041 = vunpack.c.l.b16 %v1001
    %v1042 = vunpack.c.h.b16 %v1001
    %v1043 = vunpack.c.l.b16 %v1002
    %v1044 = vunpack.c.h.b16 %v1002
    %v1045 = vunpack.c.l.b16 %v1003
    %v1046 = vunpack.c.h.b16 %v1003
    %v1047 = vunpack.c.l.b16 %v1004
    %v1048 = vunpack.c.h.b16 %v1004
    %v1049 = vunpack.c.l.b16 %v1005
    %v1050 = vunpack.c.h.b16 %v1005
    %v1051 = vunpack.c.l.b16 %v1006
    %v1052 = vunpack.c.h.b16 %v1006
    %v1053 = vunpack.c.l.b16 %v1007
    %v1054 = vunpack.c.h.b16 %v1007
    %v1055 = vunpack.c.l.b16 %v1008
    %v1056 = vunpack.c.h.b16 %v1008
    %v1057 = vpack.c.b16 %v1025, %v1025
    %v1058 = vpack.c.b16 %v1026, %v1026
    %v1059 = vpack.c.b16 %v1027, %v1027
    %v1060 = vpack.c.b16 %v1028, %v1028
    %v1061 = vpack.c.b16 %v1029, %v1029
    %v1062 = vpack.c.b16 %v1030, %v1030
    %v1063 = vpack.c.b16 %v1031, %v1031
    %v1064 = vpack.c.b16 %v1032, %v1032
    %v1065 = vpack.c.b16 %v1033, %v1033
    %v1066 = vpack.c.b16 %v1034, %v1034
    %v1067 = vpack.c.b16 %v1035, %v1035
    %v1068 = vpack.c.b16 %v1036, %v1036
    %v1069 = vpack.c.b16 %v1037, %v1037
    %v1070 = vpack.c.b16 %v1038, %v1038
    %v1071 = vpack.c.b16 %v1039, %v1039
    %v1072 = vpack.c.b16 %v1040, %v1040
    %v1073 = vpack.c.b16 %v1041, %v1041
    %v1074 = vpack.c.b16 %v1042, %v1042
    %v1075 = vpack.c.b16 %v1043, %v1043
    %v1076 = vpack.c.b16 %v1044, %v1044
    %v1077 = vpack.c.b16 %v1045, %v1045
    %v1078 = vpack.c.b16 %v1046, %v1046
    %v1079 = vpack.c.b16 %v1047, %v1047
    %v1080 = vpack.c.b16 %v1048, %v1048
    %v1081 = vpack.c.b16 %v1049, %v1049
    %v1082 = vpack.c.b16 %v1050, %v1050
    %v1083 = vpack.c.b16 %v1051, %v1051
    %v1084 = vpack.c.b16 %v1052, %v1052
    %v1085 = vpack.c.b16 %v1053, %v1053
    %v1086 = vpack.c.b16 %v1054, %v1054
    %v1087 = vpack.c.b16 %v1055, %v1055
    %v1088 = vpack.c.b16 %v1056, %v1056
    %1121 = vst [vmem:[#allocation11] sm:$0xf] %v1057
    %1122 = vst [vmem:[#allocation11 + $0x4] sm:$0xf] %v1058
    %1123 = vst [vmem:[#allocation11 + $0x8] sm:$0xf] %v1059
    %1124 = vst [vmem:[#allocation11 + $0xc] sm:$0xf] %v1060
    %1125 = vst [vmem:[#allocation11 + $0x10] sm:$0xf] %v1061
    %1126 = vst [vmem:[#allocation11 + $0x14] sm:$0xf] %v1062
    %1127 = vst [vmem:[#allocation11 + $0x18] sm:$0xf] %v1063
    %1128 = vst [vmem:[#allocation11 + $0x1c] sm:$0xf] %v1064
    %1129 = vst [vmem:[#allocation11 + $0x20] sm:$0xf] %v1065
    %1130 = vst [vmem:[#allocation11 + $0x24] sm:$0xf] %v1066
    %1131 = vst [vmem:[#allocation11 + $0x28] sm:$0xf] %v1067
    %1132 = vst [vmem:[#allocation11 + $0x2c] sm:$0xf] %v1068
    %1133 = vst [vmem:[#allocation11 + $0x30] sm:$0xf] %v1069
    %1134 = vst [vmem:[#allocation11 + $0x34] sm:$0xf] %v1070
    %1135 = vst [vmem:[#allocation11 + $0x38] sm:$0xf] %v1071
    %1136 = vst [vmem:[#allocation11 + $0x3c] sm:$0xf] %v1072
    %1137 = vst [vmem:[#allocation11 + $0x40] sm:$0xf] %v1073
    %1138 = vst [vmem:[#allocation11 + $0x44] sm:$0xf] %v1074
    %1139 = vst [vmem:[#allocation11 + $0x48] sm:$0xf] %v1075
    %1140 = vst [vmem:[#allocation11 + $0x4c] sm:$0xf] %v1076
    %1141 = vst [vmem:[#allocation11 + $0x50] sm:$0xf] %v1077
    %1142 = vst [vmem:[#allocation11 + $0x54] sm:$0xf] %v1078
    %1143 = vst [vmem:[#allocation11 + $0x58] sm:$0xf] %v1079
    %1144 = vst [vmem:[#allocation11 + $0x5c] sm:$0xf] %v1080
    %1145 = vst [vmem:[#allocation11 + $0x60] sm:$0xf] %v1081
    %1146 = vst [vmem:[#allocation11 + $0x64] sm:$0xf] %v1082
    %1147 = vst [vmem:[#allocation11 + $0x68] sm:$0xf] %v1083
    %1148 = vst [vmem:[#allocation11 + $0x6c] sm:$0xf] %v1084
    %1149 = vst [vmem:[#allocation11 + $0x70] sm:$0xf] %v1085
    %1150 = vst [vmem:[#allocation11 + $0x74] sm:$0xf] %v1086
    %1151 = vst [vmem:[#allocation11 + $0x78] sm:$0xf] %v1087
    %1152 = vst [vmem:[#allocation11 + $0x7c] sm:$0xf] %v1088
    // Predicated region
    $region42: #{gcn_forward.2} parent=1 // pred_check
      _
    $region43: #{gcn_forward.2} parent=1 // pred_check_branch
      %1154 = sbr.rel (0) target = $region45
    $region44: #{gcn_forward.2} parent=1 // pred_region
      %s1156 = ssub.s32 2048, 2048
      %1157 = vsyncadd [#allocation4], %s1156
      %s1158 = sshll.u32 [#allocation11], 4
      %s1159 = int_to_ptr.vmem [resolvable:$true] %s1158
      %1164 = dma.vmem_to_hbm [thread:$0]  %s1159, 2048, %s5, [#allocation4], 64, 64, 4
    $region45: #{gcn_forward.2} parent=1 // pred_fallthru
      _
    // Predicated region
    $region46: #{gcn_forward.2} parent=1 // pred_check
      _
    $region47: #{gcn_forward.2} parent=1 // pred_check_branch
      %1166 = sbr.rel (0) target = $region49
    $region48: #{gcn_forward.2} parent=1 // pred_region
      %1167 = dma.done [#allocation4], 2048
    $region49: #{gcn_forward.2} parent=1 // pred_fallthru
      _
    %1168 = vsyncpa [#allocation3], 1
    %1169 = vsyncpa [#allocation6], 1
    %1170 = vsyncpa [#allocation9], 1
    %1171 = vsyncpa [#allocation4], 1

</llo_original>
